<compile_context>
chip_gen: v7x
topology: tpu7x:2x2x1
jax: 0.10.0
libtpu: 0.0.40
codegen_flags: <defaults>
</compile_context>

<pallas_src>
import numpy as np
import jax
import jax.numpy as jnp
from jax.experimental import pallas as pl
from jax.experimental.pallas import tpu as pltpu

# ---------------- model hyper-parameters (small, consistent with module) ----
EMBEDDING_DIM = 15
HIDDEN_SIZE = 32          # scaled down from 200 for the small example
NUM_LAYERS = 2
VOCAB_SIZE = 28           # len(dataset.characters) + 1
OUTPUT_SIZE = VOCAB_SIZE
OUT_PAD = 128             # lane-dense padded FC output width

BATCH = 2
SEQ = 8


# ---------------------------- Pallas kernel ---------------------------------
def rnn_fc_kernel(xproj_ref,    # (T, B, H)  layer-0 input proj + (bih0+bhh0)
                  mask_ref,     # (T, B, 1)  f32 activity mask (1.0 active)
                  h0_ref,       # (L, B, H)  initial hidden
                  whhblk_ref,   # (2H, 2H)   block-diag [whh0^T, 0; 0, whh1^T]
                  wih1T_ref,    # (H, H)
                  b1_ref,       # (1, H)     bih1 + bhh1
                  wfc_ref,      # (H, OUT_PAD)
                  bfc_ref,      # (1, OUT_PAD)
                  out_ref,      # (T*B, OUT_PAD)  output logits (padded lanes)
                  hfin_ref,     # (L, B, H)       output (aliased with h0)
                  hseq_scr):    # (T*B, H) scratch: masked layer-2 states
    T, B, H = xproj_ref.shape

    # Concatenated recurrent state [h1 | h2] carried as a value: (B, 2H).
    hcat = jnp.concatenate([h0_ref[0], h0_ref[1]], axis=1)

    # T is small & static -> fully unrolled Python loop (static indices).
    # Only the fused recurrent dot, the layer-2 input dot and two tanh stay
    # on the serial critical path.
    for t in range(T):
        rec = jnp.dot(hcat, whhblk_ref[...],
                      preferred_element_type=jnp.float32)          # (B, 2H)
        h1n = jnp.tanh(xproj_ref[t] + rec[:, :H])
        h2n = jnp.tanh(jnp.dot(h1n, wih1T_ref[...],
                               preferred_element_type=jnp.float32)
                       + b1_ref[...] + rec[:, H:])

        m = mask_ref[t]                                # (B, 1) 1.0 / 0.0
        cand = jnp.concatenate([h1n, h2n], axis=1)     # (B, 2H)
        # packed-sequence semantics: padded steps do not advance the state
        hcat = hcat + m * (cand - hcat)
        # pad_packed_sequence semantics: padded output positions are zeros
        hseq_scr[pl.ds(t * B, B), :] = h2n * m

    hfin_ref[0] = hcat[:, :H]
    hfin_ref[1] = hcat[:, H:]

    # FC hoisted out of the recurrence: one (T*B,H)x(H,OUT_PAD) matmul.
    # fc(m*h) + b == m*fc(h) + b for m in {0,1}, so padded rows give the bias.
    out_ref[...] = (jnp.dot(hseq_scr[...], wfc_ref[...],
                            preferred_element_type=jnp.float32)
                    + bfc_ref[...])


# ------------------------------- wrapper ------------------------------------
def name_generator_forward(X, lengths, hidden, params):
    """X: (B, T) int32; lengths: (B,) int32; hidden: (L, B, H) f32."""
    B, T = X.shape
    E, H, O, L = EMBEDDING_DIM, HIDDEN_SIZE, OUTPUT_SIZE, NUM_LAYERS

    # Embedding lookup (glue) -> time-major.
    emb = jnp.take(params["embedding"], X, axis=0)                  # (B, T, E)
    emb_tbe = jnp.transpose(emb, (1, 0, 2)).astype(jnp.float32)     # (T, B, E)

    wih0T = params["wih0"].T.astype(jnp.float32)                    # (E, H)
    whh0T = params["whh0"].T.astype(jnp.float32)                    # (H, H)
    wih1T = params["wih1"].T.astype(jnp.float32)                    # (H, H)
    whh1T = params["whh1"].T.astype(jnp.float32)                    # (H, H)
    b0 = (params["bih0"] + params["bhh0"])[None, :].astype(jnp.float32)
    b1 = (params["bih1"] + params["bhh1"])[None, :].astype(jnp.float32)

    # Layer-0 input projection hoisted out of the serial loop (one matmul).
    xproj = (emb_tbe.reshape(T * B, E) @ wih0T + b0).reshape(T, B, H)

    # Block-diagonal recurrent weight: one MXU push for both h@Whh dots.
    whh_blk = jnp.zeros((2 * H, 2 * H), jnp.float32)
    whh_blk = whh_blk.at[:H, :H].set(whh0T).at[H:, H:].set(whh1T)

    # Lane-dense (128-wide) padded FC weights -> unmasked output stores.
    wfc_pad = jnp.zeros((H, OUT_PAD), jnp.float32).at[:, :O].set(params["wfc"].T)
    bfc_pad = jnp.zeros((1, OUT_PAD), jnp.float32).at[0, :O].set(params["bfc"])

    # Precomputed activity mask: mask[t, b] = (t < lengths[b]).
    mask = (jnp.arange(T, dtype=jnp.int32)[:, None]
            < lengths[None, :].astype(jnp.int32)).astype(jnp.float32)[:, :, None]

    # Fresh buffer so aliasing/donation never touches the caller's array.
    hidden_in = jnp.array(hidden, dtype=jnp.float32, copy=True)     # (L, B, H)

    vmem = pl.BlockSpec(memory_space=pltpu.MemorySpace.VMEM)

    out2d, hfin = pl.pallas_call(
        rnn_fc_kernel,
        out_shape=(
            jax.ShapeDtypeStruct((T * B, OUT_PAD), jnp.float32),
            jax.ShapeDtypeStruct((L, B, H), jnp.float32),
        ),
        in_specs=[vmem] * 8,
        out_specs=(vmem, vmem),
        scratch_shapes=[pltpu.VMEM((T * B, H), jnp.float32)],
        input_output_aliases={2: 1},   # hfin reuses the h0 input buffer
    )(xproj, mask, hidden_in, whh_blk, wih1T, b1, wfc_pad, bfc_pad)

    out = jnp.transpose(out2d.reshape(T, B, OUT_PAD), (1, 0, 2))    # (B, T, OUT_PAD)

    # pad_packed_sequence returns length max(lengths) (concrete host values,
    # as in the PyTorch call); also drop the lane padding back to O.
    t_out = int(np.max(np.asarray(lengths)))
    return out[:, :t_out, :O], hfin


# ---------------------------- pure-JAX reference ----------------------------
def reference_forward(X, lengths, hidden, p):
    emb = jnp.take(p["embedding"], X, axis=0)
    B, T, _ = emb.shape
    h1, h2 = hidden[0], hidden[1]
    outs = []
    for t in range(T):
        x_t = emb[:, t, :]
        h1n = jnp.tanh(x_t @ p["wih0"].T + p["bih0"] + h1 @ p["whh0"].T + p["bhh0"])
        h2n = jnp.tanh(h1n @ p["wih1"].T + p["bih1"] + h2 @ p["whh1"].T + p["bhh1"])
        active = (t < lengths)[:, None]
        h1 = jnp.where(active, h1n, h1)
        h2 = jnp.where(active, h2n, h2)
        y = jnp.where(active, h2n, jnp.zeros_like(h2n))
        outs.append(y @ p["wfc"].T + p["bfc"])
    out = jnp.stack(outs, axis=1)
    t_out = int(np.max(np.asarray(lengths)))
    return out[:, :t_out, :], jnp.stack([h1, h2], axis=0)


# ---------------------------------- main -------------------------------------
if __name__ == "__main__":
    key = jax.random.PRNGKey(0)
    ks = jax.random.split(key, 13)

    E, H, O, V = EMBEDDING_DIM, HIDDEN_SIZE, OUTPUT_SIZE, VOCAB_SIZE
    u = lambda k, shape: jax.random.uniform(k, shape, jnp.float32, -0.1, 0.1)

    params = {
        "embedding": jax.random.normal(ks[0], (V, E), jnp.float32),
        "wih0": u(ks[1], (H, E)),
        "whh0": u(ks[2], (H, H)),
        "bih0": u(ks[3], (H,)),
        "bhh0": u(ks[4], (H,)),
        "wih1": u(ks[5], (H, H)),
        "whh1": u(ks[6], (H, H)),
        "bih1": u(ks[7], (H,)),
        "bhh1": u(ks[8], (H,)),
        "wfc": u(ks[9], (O, H)),
        "bfc": u(ks[10], (O,)),
    }

    X = jax.random.randint(ks[11], (BATCH, SEQ), 0, V, jnp.int32)
    lengths = jnp.array([SEQ, 5], dtype=jnp.int32)             # max(lengths) == SEQ
    hidden0 = jnp.zeros((NUM_LAYERS, BATCH, H), jnp.float32)   # init_hidden

    out, hidden = name_generator_forward(X, lengths, hidden0, params)
    out = jax.block_until_ready(out)
    hidden = jax.block_until_ready(hidden)

    out_ref, hidden_ref = reference_forward(X, lengths, hidden0, params)
    np.testing.assert_allclose(np.asarray(out), np.asarray(out_ref),
                               rtol=1e-4, atol=1e-5)
    np.testing.assert_allclose(np.asarray(hidden), np.asarray(hidden_ref),
                               rtol=1e-4, atol=1e-5)

    print("KERNEL_OK")
</pallas_src>

<mosaic_0001>
module attributes {stable_mosaic.version = 11 : i64} {
  func.func @rnn_fc_kernel(%arg0: memref<8x2x32xf32, #tpu.memory_space<vmem>>, %arg1: memref<8x2x1xf32, #tpu.memory_space<vmem>>, %arg2: memref<2x2x32xf32, #tpu.memory_space<vmem>>, %arg3: memref<64x64xf32, #tpu.memory_space<vmem>>, %arg4: memref<32x32xf32, #tpu.memory_space<vmem>>, %arg5: memref<1x32xf32, #tpu.memory_space<vmem>>, %arg6: memref<32x128xf32, #tpu.memory_space<vmem>>, %arg7: memref<1x128xf32, #tpu.memory_space<vmem>>, %arg8: memref<16x128xf32, #tpu.memory_space<vmem>>, %arg9: memref<2x2x32xf32, #tpu.memory_space<vmem>>, %arg10: memref<16x32xf32, #tpu.memory_space<vmem>>) attributes {dimension_semantics = [], scalar_prefetch = 0 : i64, scratch_operands = 1 : i64, tpu.core_type = #tpu.core_type<tc>} {
    %c0 = arith.constant 0 : index
    %c0_0 = arith.constant 0 : index
    %c0_1 = arith.constant 0 : index
    %0 = vector.load %arg2[%c0, %c0_0, %c0_1] : memref<2x2x32xf32, #tpu.memory_space<vmem>>, vector<1x2x32xf32>
    %1 = vector.shape_cast %0 : vector<1x2x32xf32> to vector<2x32xf32>
    %c1 = arith.constant 1 : index
    %c0_2 = arith.constant 0 : index
    %c0_3 = arith.constant 0 : index
    %2 = vector.load %arg2[%c1, %c0_2, %c0_3] : memref<2x2x32xf32, #tpu.memory_space<vmem>>, vector<1x2x32xf32>
    %3 = vector.shape_cast %2 : vector<1x2x32xf32> to vector<2x32xf32>
    %4 = tpu.concatenate %1, %3 in 1 : vector<2x32xf32>, vector<2x32xf32> -> vector<2x64xf32>
    %c0_4 = arith.constant 0 : index
    %c0_5 = arith.constant 0 : index
    %5 = vector.load %arg3[%c0_4, %c0_5] : memref<64x64xf32, #tpu.memory_space<vmem>>, vector<64x64xf32>
    %cst = arith.constant dense<0.000000e+00> : vector<2x64xf32>
    %6 = tpu.matmul %4, %5, %cst {dimension_numbers = #tpu.dot_dimension_numbers<[1], [0], [0], [1], [0, 0, 1, 1], [], []>} : vector<2x64xf32>, vector<64x64xf32>, vector<2x64xf32> -> vector<2x64xf32>
    %c0_6 = arith.constant 0 : index
    %c0_7 = arith.constant 0 : index
    %c0_8 = arith.constant 0 : index
    %7 = vector.load %arg0[%c0_6, %c0_7, %c0_8] : memref<8x2x32xf32, #tpu.memory_space<vmem>>, vector<1x2x32xf32>
    %8 = vector.shape_cast %7 : vector<1x2x32xf32> to vector<2x32xf32>
    %9 = vector.extract_strided_slice %6 {offsets = [0, 0], sizes = [2, 32], strides = [1, 1]} : vector<2x64xf32> to vector<2x32xf32>
    %10 = arith.addf %8, %9 : vector<2x32xf32>
    %11 = math.tanh %10 : vector<2x32xf32>
    %c0_9 = arith.constant 0 : index
    %c0_10 = arith.constant 0 : index
    %12 = vector.load %arg4[%c0_9, %c0_10] : memref<32x32xf32, #tpu.memory_space<vmem>>, vector<32x32xf32>
    %cst_11 = arith.constant dense<0.000000e+00> : vector<2x32xf32>
    %13 = tpu.matmul %11, %12, %cst_11 {dimension_numbers = #tpu.dot_dimension_numbers<[1], [0], [0], [1], [0, 0, 1, 1], [], []>} : vector<2x32xf32>, vector<32x32xf32>, vector<2x32xf32> -> vector<2x32xf32>
    %c0_12 = arith.constant 0 : index
    %c0_13 = arith.constant 0 : index
    %14 = vector.load %arg5[%c0_12, %c0_13] : memref<1x32xf32, #tpu.memory_space<vmem>>, vector<1x32xf32>
    %15 = vector.broadcast %14 : vector<1x32xf32> to vector<2x32xf32>
    %16 = arith.addf %13, %15 : vector<2x32xf32>
    %17 = vector.extract_strided_slice %6 {offsets = [0, 32], sizes = [2, 32], strides = [1, 1]} : vector<2x64xf32> to vector<2x32xf32>
    %18 = arith.addf %16, %17 : vector<2x32xf32>
    %19 = math.tanh %18 : vector<2x32xf32>
    %c0_14 = arith.constant 0 : index
    %c0_15 = arith.constant 0 : index
    %c0_16 = arith.constant 0 : index
    %20 = vector.load %arg1[%c0_14, %c0_15, %c0_16] : memref<8x2x1xf32, #tpu.memory_space<vmem>>, vector<1x2x1xf32>
    %21 = vector.shape_cast %20 : vector<1x2x1xf32> to vector<2x1xf32>
    %22 = tpu.concatenate %11, %19 in 1 : vector<2x32xf32>, vector<2x32xf32> -> vector<2x64xf32>
    %23 = arith.subf %22, %4 : vector<2x64xf32>
    %24 = vector.broadcast %21 : vector<2x1xf32> to vector<2x64xf32>
    %25 = arith.mulf %24, %23 : vector<2x64xf32>
    %26 = arith.addf %4, %25 : vector<2x64xf32>
    %27 = vector.broadcast %21 : vector<2x1xf32> to vector<2x32xf32>
    %28 = arith.mulf %19, %27 : vector<2x32xf32>
    %c0_17 = arith.constant 0 : index
    %c0_18 = arith.constant 0 : index
    %29 = vector.load %arg10[%c0_17, %c0_18] : memref<16x32xf32, #tpu.memory_space<vmem>>, vector<2x32xf32>
    tpu.vector_store %arg10[%c0_17, %c0_18], %28 {strides = array<i32>} : memref<16x32xf32, #tpu.memory_space<vmem>>, vector<2x32xf32>,
    %c0_19 = arith.constant 0 : index
    %c0_20 = arith.constant 0 : index
    %30 = vector.load %arg3[%c0_19, %c0_20] : memref<64x64xf32, #tpu.memory_space<vmem>>, vector<64x64xf32>
    %cst_21 = arith.constant dense<0.000000e+00> : vector<2x64xf32>
    %31 = tpu.matmul %26, %30, %cst_21 {dimension_numbers = #tpu.dot_dimension_numbers<[1], [0], [0], [1], [0, 0, 1, 1], [], []>} : vector<2x64xf32>, vector<64x64xf32>, vector<2x64xf32> -> vector<2x64xf32>
    %c1_22 = arith.constant 1 : index
    %c0_23 = arith.constant 0 : index
    %c0_24 = arith.constant 0 : index
    %32 = vector.load %arg0[%c1_22, %c0_23, %c0_24] : memref<8x2x32xf32, #tpu.memory_space<vmem>>, vector<1x2x32xf32>
    %33 = vector.shape_cast %32 : vector<1x2x32xf32> to vector<2x32xf32>
    %34 = vector.extract_strided_slice %31 {offsets = [0, 0], sizes = [2, 32], strides = [1, 1]} : vector<2x64xf32> to vector<2x32xf32>
    %35 = arith.addf %33, %34 : vector<2x32xf32>
    %36 = math.tanh %35 : vector<2x32xf32>
    %c0_25 = arith.constant 0 : index
    %c0_26 = arith.constant 0 : index
    %37 = vector.load %arg4[%c0_25, %c0_26] : memref<32x32xf32, #tpu.memory_space<vmem>>, vector<32x32xf32>
    %cst_27 = arith.constant dense<0.000000e+00> : vector<2x32xf32>
    %38 = tpu.matmul %36, %37, %cst_27 {dimension_numbers = #tpu.dot_dimension_numbers<[1], [0], [0], [1], [0, 0, 1, 1], [], []>} : vector<2x32xf32>, vector<32x32xf32>, vector<2x32xf32> -> vector<2x32xf32>
    %c0_28 = arith.constant 0 : index
    %c0_29 = arith.constant 0 : index
    %39 = vector.load %arg5[%c0_28, %c0_29] : memref<1x32xf32, #tpu.memory_space<vmem>>, vector<1x32xf32>
    %40 = vector.broadcast %39 : vector<1x32xf32> to vector<2x32xf32>
    %41 = arith.addf %38, %40 : vector<2x32xf32>
    %42 = vector.extract_strided_slice %31 {offsets = [0, 32], sizes = [2, 32], strides = [1, 1]} : vector<2x64xf32> to vector<2x32xf32>
    %43 = arith.addf %41, %42 : vector<2x32xf32>
    %44 = math.tanh %43 : vector<2x32xf32>
    %c1_30 = arith.constant 1 : index
    %c0_31 = arith.constant 0 : index
    %c0_32 = arith.constant 0 : index
    %45 = vector.load %arg1[%c1_30, %c0_31, %c0_32] : memref<8x2x1xf32, #tpu.memory_space<vmem>>, vector<1x2x1xf32>
    %46 = vector.shape_cast %45 : vector<1x2x1xf32> to vector<2x1xf32>
    %47 = tpu.concatenate %36, %44 in 1 : vector<2x32xf32>, vector<2x32xf32> -> vector<2x64xf32>
    %48 = arith.subf %47, %26 : vector<2x64xf32>
    %49 = vector.broadcast %46 : vector<2x1xf32> to vector<2x64xf32>
    %50 = arith.mulf %49, %48 : vector<2x64xf32>
    %51 = arith.addf %26, %50 : vector<2x64xf32>
    %52 = vector.broadcast %46 : vector<2x1xf32> to vector<2x32xf32>
    %53 = arith.mulf %44, %52 : vector<2x32xf32>
    %c2 = arith.constant 2 : index
    %c0_33 = arith.constant 0 : index
    %54 = vector.load %arg10[%c2, %c0_33] : memref<16x32xf32, #tpu.memory_space<vmem>>, vector<2x32xf32>
    tpu.vector_store %arg10[%c2, %c0_33], %53 {strides = array<i32>} : memref<16x32xf32, #tpu.memory_space<vmem>>, vector<2x32xf32>,
    %c0_34 = arith.constant 0 : index
    %c0_35 = arith.constant 0 : index
    %55 = vector.load %arg3[%c0_34, %c0_35] : memref<64x64xf32, #tpu.memory_space<vmem>>, vector<64x64xf32>
    %cst_36 = arith.constant dense<0.000000e+00> : vector<2x64xf32>
    %56 = tpu.matmul %51, %55, %cst_36 {dimension_numbers = #tpu.dot_dimension_numbers<[1], [0], [0], [1], [0, 0, 1, 1], [], []>} : vector<2x64xf32>, vector<64x64xf32>, vector<2x64xf32> -> vector<2x64xf32>
    %c2_37 = arith.constant 2 : index
    %c0_38 = arith.constant 0 : index
    %c0_39 = arith.constant 0 : index
    %57 = vector.load %arg0[%c2_37, %c0_38, %c0_39] : memref<8x2x32xf32, #tpu.memory_space<vmem>>, vector<1x2x32xf32>
    %58 = vector.shape_cast %57 : vector<1x2x32xf32> to vector<2x32xf32>
    %59 = vector.extract_strided_slice %56 {offsets = [0, 0], sizes = [2, 32], strides = [1, 1]} : vector<2x64xf32> to vector<2x32xf32>
    %60 = arith.addf %58, %59 : vector<2x32xf32>
    %61 = math.tanh %60 : vector<2x32xf32>
    %c0_40 = arith.constant 0 : index
    %c0_41 = arith.constant 0 : index
    %62 = vector.load %arg4[%c0_40, %c0_41] : memref<32x32xf32, #tpu.memory_space<vmem>>, vector<32x32xf32>
    %cst_42 = arith.constant dense<0.000000e+00> : vector<2x32xf32>
    %63 = tpu.matmul %61, %62, %cst_42 {dimension_numbers = #tpu.dot_dimension_numbers<[1], [0], [0], [1], [0, 0, 1, 1], [], []>} : vector<2x32xf32>, vector<32x32xf32>, vector<2x32xf32> -> vector<2x32xf32>
    %c0_43 = arith.constant 0 : index
    %c0_44 = arith.constant 0 : index
    %64 = vector.load %arg5[%c0_43, %c0_44] : memref<1x32xf32, #tpu.memory_space<vmem>>, vector<1x32xf32>
    %65 = vector.broadcast %64 : vector<1x32xf32> to vector<2x32xf32>
    %66 = arith.addf %63, %65 : vector<2x32xf32>
    %67 = vector.extract_strided_slice %56 {offsets = [0, 32], sizes = [2, 32], strides = [1, 1]} : vector<2x64xf32> to vector<2x32xf32>
    %68 = arith.addf %66, %67 : vector<2x32xf32>
    %69 = math.tanh %68 : vector<2x32xf32>
    %c2_45 = arith.constant 2 : index
    %c0_46 = arith.constant 0 : index
    %c0_47 = arith.constant 0 : index
    %70 = vector.load %arg1[%c2_45, %c0_46, %c0_47] : memref<8x2x1xf32, #tpu.memory_space<vmem>>, vector<1x2x1xf32>
    %71 = vector.shape_cast %70 : vector<1x2x1xf32> to vector<2x1xf32>
    %72 = tpu.concatenate %61, %69 in 1 : vector<2x32xf32>, vector<2x32xf32> -> vector<2x64xf32>
    %73 = arith.subf %72, %51 : vector<2x64xf32>
    %74 = vector.broadcast %71 : vector<2x1xf32> to vector<2x64xf32>
    %75 = arith.mulf %74, %73 : vector<2x64xf32>
    %76 = arith.addf %51, %75 : vector<2x64xf32>
    %77 = vector.broadcast %71 : vector<2x1xf32> to vector<2x32xf32>
    %78 = arith.mulf %69, %77 : vector<2x32xf32>
    %c4 = arith.constant 4 : index
    %c0_48 = arith.constant 0 : index
    %79 = vector.load %arg10[%c4, %c0_48] : memref<16x32xf32, #tpu.memory_space<vmem>>, vector<2x32xf32>
    tpu.vector_store %arg10[%c4, %c0_48], %78 {strides = array<i32>} : memref<16x32xf32, #tpu.memory_space<vmem>>, vector<2x32xf32>,
    %c0_49 = arith.constant 0 : index
    %c0_50 = arith.constant 0 : index
    %80 = vector.load %arg3[%c0_49, %c0_50] : memref<64x64xf32, #tpu.memory_space<vmem>>, vector<64x64xf32>
    %cst_51 = arith.constant dense<0.000000e+00> : vector<2x64xf32>
    %81 = tpu.matmul %76, %80, %cst_51 {dimension_numbers = #tpu.dot_dimension_numbers<[1], [0], [0], [1], [0, 0, 1, 1], [], []>} : vector<2x64xf32>, vector<64x64xf32>, vector<2x64xf32> -> vector<2x64xf32>
    %c3 = arith.constant 3 : index
    %c0_52 = arith.constant 0 : index
    %c0_53 = arith.constant 0 : index
    %82 = vector.load %arg0[%c3, %c0_52, %c0_53] : memref<8x2x32xf32, #tpu.memory_space<vmem>>, vector<1x2x32xf32>
    %83 = vector.shape_cast %82 : vector<1x2x32xf32> to vector<2x32xf32>
    %84 = vector.extract_strided_slice %81 {offsets = [0, 0], sizes = [2, 32], strides = [1, 1]} : vector<2x64xf32> to vector<2x32xf32>
    %85 = arith.addf %83, %84 : vector<2x32xf32>
    %86 = math.tanh %85 : vector<2x32xf32>
    %c0_54 = arith.constant 0 : index
    %c0_55 = arith.constant 0 : index
    %87 = vector.load %arg4[%c0_54, %c0_55] : memref<32x32xf32, #tpu.memory_space<vmem>>, vector<32x32xf32>
    %cst_56 = arith.constant dense<0.000000e+00> : vector<2x32xf32>
    %88 = tpu.matmul %86, %87, %cst_56 {dimension_numbers = #tpu.dot_dimension_numbers<[1], [0], [0], [1], [0, 0, 1, 1], [], []>} : vector<2x32xf32>, vector<32x32xf32>, vector<2x32xf32> -> vector<2x32xf32>
    %c0_57 = arith.constant 0 : index
    %c0_58 = arith.constant 0 : index
    %89 = vector.load %arg5[%c0_57, %c0_58] : memref<1x32xf32, #tpu.memory_space<vmem>>, vector<1x32xf32>
    %90 = vector.broadcast %89 : vector<1x32xf32> to vector<2x32xf32>
    %91 = arith.addf %88, %90 : vector<2x32xf32>
    %92 = vector.extract_strided_slice %81 {offsets = [0, 32], sizes = [2, 32], strides = [1, 1]} : vector<2x64xf32> to vector<2x32xf32>
    %93 = arith.addf %91, %92 : vector<2x32xf32>
    %94 = math.tanh %93 : vector<2x32xf32>
    %c3_59 = arith.constant 3 : index
    %c0_60 = arith.constant 0 : index
    %c0_61 = arith.constant 0 : index
    %95 = vector.load %arg1[%c3_59, %c0_60, %c0_61] : memref<8x2x1xf32, #tpu.memory_space<vmem>>, vector<1x2x1xf32>
    %96 = vector.shape_cast %95 : vector<1x2x1xf32> to vector<2x1xf32>
    %97 = tpu.concatenate %86, %94 in 1 : vector<2x32xf32>, vector<2x32xf32> -> vector<2x64xf32>
    %98 = arith.subf %97, %76 : vector<2x64xf32>
    %99 = vector.broadcast %96 : vector<2x1xf32> to vector<2x64xf32>
    %100 = arith.mulf %99, %98 : vector<2x64xf32>
    %101 = arith.addf %76, %100 : vector<2x64xf32>
    %102 = vector.broadcast %96 : vector<2x1xf32> to vector<2x32xf32>
    %103 = arith.mulf %94, %102 : vector<2x32xf32>
    %c6 = arith.constant 6 : index
    %c0_62 = arith.constant 0 : index
    %104 = vector.load %arg10[%c6, %c0_62] : memref<16x32xf32, #tpu.memory_space<vmem>>, vector<2x32xf32>
    tpu.vector_store %arg10[%c6, %c0_62], %103 {strides = array<i32>} : memref<16x32xf32, #tpu.memory_space<vmem>>, vector<2x32xf32>,
    %c0_63 = arith.constant 0 : index
    %c0_64 = arith.constant 0 : index
    %105 = vector.load %arg3[%c0_63, %c0_64] : memref<64x64xf32, #tpu.memory_space<vmem>>, vector<64x64xf32>
    %cst_65 = arith.constant dense<0.000000e+00> : vector<2x64xf32>
    %106 = tpu.matmul %101, %105, %cst_65 {dimension_numbers = #tpu.dot_dimension_numbers<[1], [0], [0], [1], [0, 0, 1, 1], [], []>} : vector<2x64xf32>, vector<64x64xf32>, vector<2x64xf32> -> vector<2x64xf32>
    %c4_66 = arith.constant 4 : index
    %c0_67 = arith.constant 0 : index
    %c0_68 = arith.constant 0 : index
    %107 = vector.load %arg0[%c4_66, %c0_67, %c0_68] : memref<8x2x32xf32, #tpu.memory_space<vmem>>, vector<1x2x32xf32>
    %108 = vector.shape_cast %107 : vector<1x2x32xf32> to vector<2x32xf32>
    %109 = vector.extract_strided_slice %106 {offsets = [0, 0], sizes = [2, 32], strides = [1, 1]} : vector<2x64xf32> to vector<2x32xf32>
    %110 = arith.addf %108, %109 : vector<2x32xf32>
    %111 = math.tanh %110 : vector<2x32xf32>
    %c0_69 = arith.constant 0 : index
    %c0_70 = arith.constant 0 : index
    %112 = vector.load %arg4[%c0_69, %c0_70] : memref<32x32xf32, #tpu.memory_space<vmem>>, vector<32x32xf32>
    %cst_71 = arith.constant dense<0.000000e+00> : vector<2x32xf32>
    %113 = tpu.matmul %111, %112, %cst_71 {dimension_numbers = #tpu.dot_dimension_numbers<[1], [0], [0], [1], [0, 0, 1, 1], [], []>} : vector<2x32xf32>, vector<32x32xf32>, vector<2x32xf32> -> vector<2x32xf32>
    %c0_72 = arith.constant 0 : index
    %c0_73 = arith.constant 0 : index
    %114 = vector.load %arg5[%c0_72, %c0_73] : memref<1x32xf32, #tpu.memory_space<vmem>>, vector<1x32xf32>
    %115 = vector.broadcast %114 : vector<1x32xf32> to vector<2x32xf32>
    %116 = arith.addf %113, %115 : vector<2x32xf32>
    %117 = vector.extract_strided_slice %106 {offsets = [0, 32], sizes = [2, 32], strides = [1, 1]} : vector<2x64xf32> to vector<2x32xf32>
    %118 = arith.addf %116, %117 : vector<2x32xf32>
    %119 = math.tanh %118 : vector<2x32xf32>
    %c4_74 = arith.constant 4 : index
    %c0_75 = arith.constant 0 : index
    %c0_76 = arith.constant 0 : index
    %120 = vector.load %arg1[%c4_74, %c0_75, %c0_76] : memref<8x2x1xf32, #tpu.memory_space<vmem>>, vector<1x2x1xf32>
    %121 = vector.shape_cast %120 : vector<1x2x1xf32> to vector<2x1xf32>
    %122 = tpu.concatenate %111, %119 in 1 : vector<2x32xf32>, vector<2x32xf32> -> vector<2x64xf32>
    %123 = arith.subf %122, %101 : vector<2x64xf32>
    %124 = vector.broadcast %121 : vector<2x1xf32> to vector<2x64xf32>
    %125 = arith.mulf %124, %123 : vector<2x64xf32>
    %126 = arith.addf %101, %125 : vector<2x64xf32>
    %127 = vector.broadcast %121 : vector<2x1xf32> to vector<2x32xf32>
    %128 = arith.mulf %119, %127 : vector<2x32xf32>
    %c8 = arith.constant 8 : index
    %c0_77 = arith.constant 0 : index
    %129 = vector.load %arg10[%c8, %c0_77] : memref<16x32xf32, #tpu.memory_space<vmem>>, vector<2x32xf32>
    tpu.vector_store %arg10[%c8, %c0_77], %128 {strides = array<i32>} : memref<16x32xf32, #tpu.memory_space<vmem>>, vector<2x32xf32>,
    %c0_78 = arith.constant 0 : index
    %c0_79 = arith.constant 0 : index
    %130 = vector.load %arg3[%c0_78, %c0_79] : memref<64x64xf32, #tpu.memory_space<vmem>>, vector<64x64xf32>
    %cst_80 = arith.constant dense<0.000000e+00> : vector<2x64xf32>
    %131 = tpu.matmul %126, %130, %cst_80 {dimension_numbers = #tpu.dot_dimension_numbers<[1], [0], [0], [1], [0, 0, 1, 1], [], []>} : vector<2x64xf32>, vector<64x64xf32>, vector<2x64xf32> -> vector<2x64xf32>
    %c5 = arith.constant 5 : index
    %c0_81 = arith.constant 0 : index
    %c0_82 = arith.constant 0 : index
    %132 = vector.load %arg0[%c5, %c0_81, %c0_82] : memref<8x2x32xf32, #tpu.memory_space<vmem>>, vector<1x2x32xf32>
    %133 = vector.shape_cast %132 : vector<1x2x32xf32> to vector<2x32xf32>
    %134 = vector.extract_strided_slice %131 {offsets = [0, 0], sizes = [2, 32], strides = [1, 1]} : vector<2x64xf32> to vector<2x32xf32>
    %135 = arith.addf %133, %134 : vector<2x32xf32>
    %136 = math.tanh %135 : vector<2x32xf32>
    %c0_83 = arith.constant 0 : index
    %c0_84 = arith.constant 0 : index
    %137 = vector.load %arg4[%c0_83, %c0_84] : memref<32x32xf32, #tpu.memory_space<vmem>>, vector<32x32xf32>
    %cst_85 = arith.constant dense<0.000000e+00> : vector<2x32xf32>
    %138 = tpu.matmul %136, %137, %cst_85 {dimension_numbers = #tpu.dot_dimension_numbers<[1], [0], [0], [1], [0, 0, 1, 1], [], []>} : vector<2x32xf32>, vector<32x32xf32>, vector<2x32xf32> -> vector<2x32xf32>
    %c0_86 = arith.constant 0 : index
    %c0_87 = arith.constant 0 : index
    %139 = vector.load %arg5[%c0_86, %c0_87] : memref<1x32xf32, #tpu.memory_space<vmem>>, vector<1x32xf32>
    %140 = vector.broadcast %139 : vector<1x32xf32> to vector<2x32xf32>
    %141 = arith.addf %138, %140 : vector<2x32xf32>
    %142 = vector.extract_strided_slice %131 {offsets = [0, 32], sizes = [2, 32], strides = [1, 1]} : vector<2x64xf32> to vector<2x32xf32>
    %143 = arith.addf %141, %142 : vector<2x32xf32>
    %144 = math.tanh %143 : vector<2x32xf32>
    %c5_88 = arith.constant 5 : index
    %c0_89 = arith.constant 0 : index
    %c0_90 = arith.constant 0 : index
    %145 = vector.load %arg1[%c5_88, %c0_89, %c0_90] : memref<8x2x1xf32, #tpu.memory_space<vmem>>, vector<1x2x1xf32>
    %146 = vector.shape_cast %145 : vector<1x2x1xf32> to vector<2x1xf32>
    %147 = tpu.concatenate %136, %144 in 1 : vector<2x32xf32>, vector<2x32xf32> -> vector<2x64xf32>
    %148 = arith.subf %147, %126 : vector<2x64xf32>
    %149 = vector.broadcast %146 : vector<2x1xf32> to vector<2x64xf32>
    %150 = arith.mulf %149, %148 : vector<2x64xf32>
    %151 = arith.addf %126, %150 : vector<2x64xf32>
    %152 = vector.broadcast %146 : vector<2x1xf32> to vector<2x32xf32>
    %153 = arith.mulf %144, %152 : vector<2x32xf32>
    %c10 = arith.constant 10 : index
    %c0_91 = arith.constant 0 : index
    %154 = vector.load %arg10[%c10, %c0_91] : memref<16x32xf32, #tpu.memory_space<vmem>>, vector<2x32xf32>
    tpu.vector_store %arg10[%c10, %c0_91], %153 {strides = array<i32>} : memref<16x32xf32, #tpu.memory_space<vmem>>, vector<2x32xf32>,
    %c0_92 = arith.constant 0 : index
    %c0_93 = arith.constant 0 : index
    %155 = vector.load %arg3[%c0_92, %c0_93] : memref<64x64xf32, #tpu.memory_space<vmem>>, vector<64x64xf32>
    %cst_94 = arith.constant dense<0.000000e+00> : vector<2x64xf32>
    %156 = tpu.matmul %151, %155, %cst_94 {dimension_numbers = #tpu.dot_dimension_numbers<[1], [0], [0], [1], [0, 0, 1, 1], [], []>} : vector<2x64xf32>, vector<64x64xf32>, vector<2x64xf32> -> vector<2x64xf32>
    %c6_95 = arith.constant 6 : index
    %c0_96 = arith.constant 0 : index
    %c0_97 = arith.constant 0 : index
    %157 = vector.load %arg0[%c6_95, %c0_96, %c0_97] : memref<8x2x32xf32, #tpu.memory_space<vmem>>, vector<1x2x32xf32>
    %158 = vector.shape_cast %157 : vector<1x2x32xf32> to vector<2x32xf32>
    %159 = vector.extract_strided_slice %156 {offsets = [0, 0], sizes = [2, 32], strides = [1, 1]} : vector<2x64xf32> to vector<2x32xf32>
    %160 = arith.addf %158, %159 : vector<2x32xf32>
    %161 = math.tanh %160 : vector<2x32xf32>
    %c0_98 = arith.constant 0 : index
    %c0_99 = arith.constant 0 : index
    %162 = vector.load %arg4[%c0_98, %c0_99] : memref<32x32xf32, #tpu.memory_space<vmem>>, vector<32x32xf32>
    %cst_100 = arith.constant dense<0.000000e+00> : vector<2x32xf32>
    %163 = tpu.matmul %161, %162, %cst_100 {dimension_numbers = #tpu.dot_dimension_numbers<[1], [0], [0], [1], [0, 0, 1, 1], [], []>} : vector<2x32xf32>, vector<32x32xf32>, vector<2x32xf32> -> vector<2x32xf32>
    %c0_101 = arith.constant 0 : index
    %c0_102 = arith.constant 0 : index
    %164 = vector.load %arg5[%c0_101, %c0_102] : memref<1x32xf32, #tpu.memory_space<vmem>>, vector<1x32xf32>
    %165 = vector.broadcast %164 : vector<1x32xf32> to vector<2x32xf32>
    %166 = arith.addf %163, %165 : vector<2x32xf32>
    %167 = vector.extract_strided_slice %156 {offsets = [0, 32], sizes = [2, 32], strides = [1, 1]} : vector<2x64xf32> to vector<2x32xf32>
    %168 = arith.addf %166, %167 : vector<2x32xf32>
    %169 = math.tanh %168 : vector<2x32xf32>
    %c6_103 = arith.constant 6 : index
    %c0_104 = arith.constant 0 : index
    %c0_105 = arith.constant 0 : index
    %170 = vector.load %arg1[%c6_103, %c0_104, %c0_105] : memref<8x2x1xf32, #tpu.memory_space<vmem>>, vector<1x2x1xf32>
    %171 = vector.shape_cast %170 : vector<1x2x1xf32> to vector<2x1xf32>
    %172 = tpu.concatenate %161, %169 in 1 : vector<2x32xf32>, vector<2x32xf32> -> vector<2x64xf32>
    %173 = arith.subf %172, %151 : vector<2x64xf32>
    %174 = vector.broadcast %171 : vector<2x1xf32> to vector<2x64xf32>
    %175 = arith.mulf %174, %173 : vector<2x64xf32>
    %176 = arith.addf %151, %175 : vector<2x64xf32>
    %177 = vector.broadcast %171 : vector<2x1xf32> to vector<2x32xf32>
    %178 = arith.mulf %169, %177 : vector<2x32xf32>
    %c12 = arith.constant 12 : index
    %c0_106 = arith.constant 0 : index
    %179 = vector.load %arg10[%c12, %c0_106] : memref<16x32xf32, #tpu.memory_space<vmem>>, vector<2x32xf32>
    tpu.vector_store %arg10[%c12, %c0_106], %178 {strides = array<i32>} : memref<16x32xf32, #tpu.memory_space<vmem>>, vector<2x32xf32>,
    %c0_107 = arith.constant 0 : index
    %c0_108 = arith.constant 0 : index
    %180 = vector.load %arg3[%c0_107, %c0_108] : memref<64x64xf32, #tpu.memory_space<vmem>>, vector<64x64xf32>
    %cst_109 = arith.constant dense<0.000000e+00> : vector<2x64xf32>
    %181 = tpu.matmul %176, %180, %cst_109 {dimension_numbers = #tpu.dot_dimension_numbers<[1], [0], [0], [1], [0, 0, 1, 1], [], []>} : vector<2x64xf32>, vector<64x64xf32>, vector<2x64xf32> -> vector<2x64xf32>
    %c7 = arith.constant 7 : index
    %c0_110 = arith.constant 0 : index
    %c0_111 = arith.constant 0 : index
    %182 = vector.load %arg0[%c7, %c0_110, %c0_111] : memref<8x2x32xf32, #tpu.memory_space<vmem>>, vector<1x2x32xf32>
    %183 = vector.shape_cast %182 : vector<1x2x32xf32> to vector<2x32xf32>
    %184 = vector.extract_strided_slice %181 {offsets = [0, 0], sizes = [2, 32], strides = [1, 1]} : vector<2x64xf32> to vector<2x32xf32>
    %185 = arith.addf %183, %184 : vector<2x32xf32>
    %186 = math.tanh %185 : vector<2x32xf32>
    %c0_112 = arith.constant 0 : index
    %c0_113 = arith.constant 0 : index
    %187 = vector.load %arg4[%c0_112, %c0_113] : memref<32x32xf32, #tpu.memory_space<vmem>>, vector<32x32xf32>
    %cst_114 = arith.constant dense<0.000000e+00> : vector<2x32xf32>
    %188 = tpu.matmul %186, %187, %cst_114 {dimension_numbers = #tpu.dot_dimension_numbers<[1], [0], [0], [1], [0, 0, 1, 1], [], []>} : vector<2x32xf32>, vector<32x32xf32>, vector<2x32xf32> -> vector<2x32xf32>
    %c0_115 = arith.constant 0 : index
    %c0_116 = arith.constant 0 : index
    %189 = vector.load %arg5[%c0_115, %c0_116] : memref<1x32xf32, #tpu.memory_space<vmem>>, vector<1x32xf32>
    %190 = vector.broadcast %189 : vector<1x32xf32> to vector<2x32xf32>
    %191 = arith.addf %188, %190 : vector<2x32xf32>
    %192 = vector.extract_strided_slice %181 {offsets = [0, 32], sizes = [2, 32], strides = [1, 1]} : vector<2x64xf32> to vector<2x32xf32>
    %193 = arith.addf %191, %192 : vector<2x32xf32>
    %194 = math.tanh %193 : vector<2x32xf32>
    %c7_117 = arith.constant 7 : index
    %c0_118 = arith.constant 0 : index
    %c0_119 = arith.constant 0 : index
    %195 = vector.load %arg1[%c7_117, %c0_118, %c0_119] : memref<8x2x1xf32, #tpu.memory_space<vmem>>, vector<1x2x1xf32>
    %196 = vector.shape_cast %195 : vector<1x2x1xf32> to vector<2x1xf32>
    %197 = tpu.concatenate %186, %194 in 1 : vector<2x32xf32>, vector<2x32xf32> -> vector<2x64xf32>
    %198 = arith.subf %197, %176 : vector<2x64xf32>
    %199 = vector.broadcast %196 : vector<2x1xf32> to vector<2x64xf32>
    %200 = arith.mulf %199, %198 : vector<2x64xf32>
    %201 = arith.addf %176, %200 : vector<2x64xf32>
    %202 = vector.broadcast %196 : vector<2x1xf32> to vector<2x32xf32>
    %203 = arith.mulf %194, %202 : vector<2x32xf32>
    %c14 = arith.constant 14 : index
    %c0_120 = arith.constant 0 : index
    %204 = vector.load %arg10[%c14, %c0_120] : memref<16x32xf32, #tpu.memory_space<vmem>>, vector<2x32xf32>
    tpu.vector_store %arg10[%c14, %c0_120], %203 {strides = array<i32>} : memref<16x32xf32, #tpu.memory_space<vmem>>, vector<2x32xf32>,
    %205 = vector.extract_strided_slice %201 {offsets = [0, 0], sizes = [2, 32], strides = [1, 1]} : vector<2x64xf32> to vector<2x32xf32>
    %c0_121 = arith.constant 0 : index
    %c0_122 = arith.constant 0 : index
    %c0_123 = arith.constant 0 : index
    %206 = vector.load %arg9[%c0_121, %c0_122, %c0_123] : memref<2x2x32xf32, #tpu.memory_space<vmem>>, vector<1x2x32xf32>
    %207 = vector.shape_cast %206 : vector<1x2x32xf32> to vector<2x32xf32>
    %208 = vector.shape_cast %205 : vector<2x32xf32> to vector<1x2x32xf32>
    tpu.vector_store %arg9[%c0_121, %c0_122, %c0_123], %208 {strides = array<i32>} : memref<2x2x32xf32, #tpu.memory_space<vmem>>, vector<1x2x32xf32>,
    %209 = vector.extract_strided_slice %201 {offsets = [0, 32], sizes = [2, 32], strides = [1, 1]} : vector<2x64xf32> to vector<2x32xf32>
    %c1_124 = arith.constant 1 : index
    %c0_125 = arith.constant 0 : index
    %c0_126 = arith.constant 0 : index
    %210 = vector.load %arg9[%c1_124, %c0_125, %c0_126] : memref<2x2x32xf32, #tpu.memory_space<vmem>>, vector<1x2x32xf32>
    %211 = vector.shape_cast %210 : vector<1x2x32xf32> to vector<2x32xf32>
    %212 = vector.shape_cast %209 : vector<2x32xf32> to vector<1x2x32xf32>
    tpu.vector_store %arg9[%c1_124, %c0_125, %c0_126], %212 {strides = array<i32>} : memref<2x2x32xf32, #tpu.memory_space<vmem>>, vector<1x2x32xf32>,
    %c0_127 = arith.constant 0 : index
    %c0_128 = arith.constant 0 : index
    %213 = vector.load %arg10[%c0_127, %c0_128] : memref<16x32xf32, #tpu.memory_space<vmem>>, vector<16x32xf32>
    %c0_129 = arith.constant 0 : index
    %c0_130 = arith.constant 0 : index
    %214 = vector.load %arg6[%c0_129, %c0_130] : memref<32x128xf32, #tpu.memory_space<vmem>>, vector<32x128xf32>
    %cst_131 = arith.constant dense<0.000000e+00> : vector<16x128xf32>
    %215 = tpu.matmul %213, %214, %cst_131 {dimension_numbers = #tpu.dot_dimension_numbers<[1], [0], [0], [1], [0, 0, 1, 1], [], []>} : vector<16x32xf32>, vector<32x128xf32>, vector<16x128xf32> -> vector<16x128xf32>
    %c0_132 = arith.constant 0 : index
    %c0_133 = arith.constant 0 : index
    %216 = vector.load %arg7[%c0_132, %c0_133] : memref<1x128xf32, #tpu.memory_space<vmem>>, vector<1x128xf32>
    %217 = vector.broadcast %216 : vector<1x128xf32> to vector<16x128xf32>
    %218 = arith.addf %215, %217 : vector<16x128xf32>
    %c0_134 = arith.constant 0 : index
    %c0_135 = arith.constant 0 : index
    %219 = vector.load %arg8[%c0_134, %c0_135] : memref<16x128xf32, #tpu.memory_space<vmem>>, vector<16x128xf32>
    tpu.vector_store %arg8[%c0_134, %c0_135], %218 {strides = array<i32>} : memref<16x128xf32, #tpu.memory_space<vmem>>, vector<16x128xf32>,
    return
  }
}

</mosaic_0001>

<llo_original>
// kernel: tpu_custom_call.1
$region0: #{tpu_custom_call.1}
  #allocation0 [shape = 'u32[]', space=smem, size = 0x4, offset = 0x4, fixed_abs, tag = 'smem constant byte address 0x4 - core index']
  #allocation1 [shape = 'u32[144,128]{1,0:T(1,128)}', space=vmem, size = 0x12000, scoped, tag = 'internal scratch']
  #allocation2 [shape = 'f32[16,32]{1,0:T(8,128)}', space=vmem, size = 0x2000, scoped, tag = 'scratch operand']
  %s0 = inlined_call_operand.vmem [shape: f32[8,2,32], index: 0, kind: input, shape index: {}]
  %s1 = inlined_call_operand.vmem [shape: f32[8,2,1], index: 1, kind: input, shape index: {}]
  %s2 = inlined_call_operand.hbm [shape: f32[2,2,32], index: 2, kind: input, shape index: {}, may-alias: {2,9}]
  %s3 = inlined_call_operand.hbm [shape: f32[64,64], index: 3, kind: input, shape index: {}]
  %s4 = inlined_call_operand.vmem [shape: f32[32,32], index: 4, kind: input, shape index: {}]
  %s5 = inlined_call_operand.hbm [shape: f32[1,32], index: 5, kind: input, shape index: {}]
  %s6 = inlined_call_operand.hbm [shape: f32[32,128], index: 6, kind: input, shape index: {}]
  %s7 = inlined_call_operand.hbm [shape: f32[1,128], index: 7, kind: input, shape index: {}]
  %s8 = inlined_call_operand.hbm [shape: f32[16,128], index: 8, kind: output, shape index: {0}]
  %s9 = inlined_call_operand.hbm [shape: f32[2,2,32], index: 9, kind: output, shape index: {1}, may-alias: {2,9}]
  %10 = xla_tuple %s8, %s9
  %s11 = sld [smem:[#allocation0]]
  $region70: #{tpu_custom_call.1} parent=0
    _
  %s13 = ssub.s32 1, %s11
  %s14 = scalar_select 0, %s13, %s11
  $region1: #{tpu_custom_call.1} parent=0
    #allocation3 [shape = 'u8[2048]{0}', space=vmem, size = 0x800, scoped, tag = 'input window, operand 2, single buffered']
    #allocation4 [shape = 's32[1]{0}', space=sflag, size = 0x4, scoped, tag = 'scoped memory for tpu_custom_call.1']
    #allocation5 [shape = 's32[1]{0}', space=sflag, size = 0x4, scoped, tag = 'scoped memory for tpu_custom_call.1']
    #allocation6 [shape = 'u8[32768]{0}', space=vmem, size = 0x8000, scoped, tag = 'input window, operand 3, single buffered']
    #allocation7 [shape = 's32[1]{0}', space=sflag, size = 0x4, scoped, tag = 'scoped memory for tpu_custom_call.1']
    #allocation8 [shape = 'u8[512]{0}', space=vmem, size = 0x400, scoped, tag = 'input window, operand 5, single buffered']
    #allocation9 [shape = 'u8[16384]{0}', space=vmem, size = 0x4000, scoped, tag = 'input window, operand 6, single buffered']
    #allocation10 [shape = 's32[1]{0}', space=sflag, size = 0x4, scoped, tag = 'scoped memory for tpu_custom_call.1']
    #allocation11 [shape = 'u8[512]{0}', space=vmem, size = 0x400, scoped, tag = 'input window, operand 7, single buffered']
    #allocation12 [shape = 'u8[8192]{0}', space=vmem, size = 0x2000, scoped, tag = 'output window, operand 0, single buffered']
    #allocation13 [shape = 'u8[2048]{0}', space=vmem, size = 0x800, scoped, tag = 'output window, operand 1, single buffered']
    #allocation14 [shape = 's32[1]{0}', space=sflag, size = 0x4, scoped, tag = 'scoped memory for tpu_custom_call.1']
    %15 = vsyncpa [#allocation4], 0
    %16 = vsyncpa [#allocation7], 0
    %17 = vsyncpa [#allocation10], 0
    %18 = vsyncpa [#allocation5], 0
    %19 = vsyncpa [#allocation14], 0
    // Predicated region
    $region2: #{tpu_custom_call.1} parent=1 // pred_check
      _
    $region3: #{tpu_custom_call.1} parent=1 // pred_check_branch
      %21 = sbr.rel (0) target = $region5
    $region4: #{tpu_custom_call.1} parent=1 // pred_region
      _
    $region5: #{tpu_custom_call.1} parent=1 // pred_fallthru
      _
    // Predicated region
    $region6: #{tpu_custom_call.1} parent=1 // pred_check
      _
    $region7: #{tpu_custom_call.1} parent=1 // pred_check_branch
      %23 = sbr.rel (0) target = $region9
    $region8: #{tpu_custom_call.1} parent=1 // pred_region
      _
    $region9: #{tpu_custom_call.1} parent=1 // pred_fallthru
      _
    // Predicated region
    $region10: #{tpu_custom_call.1} parent=1 // pred_check
      _
    $region11: #{tpu_custom_call.1} parent=1 // pred_check_branch
      %25 = sbr.rel (0) target = $region13
    $region12: #{tpu_custom_call.1} parent=1 // pred_region
      %s27 = ssub.s32 64, 64
      %28 = vsyncadd [#allocation4], %s27
      %s29 = sshll.u32 [#allocation3], 4
      %s30 = int_to_ptr.vmem [resolvable:$true] %s29
      %35 = dma.hbm_to_vmem [thread:$0]  %s2, 64, %s30, [#allocation4], 32, 32, 2
    $region13: #{tpu_custom_call.1} parent=1 // pred_fallthru
      _
    // Predicated region
    $region14: #{tpu_custom_call.1} parent=1 // pred_check
      _
    $region15: #{tpu_custom_call.1} parent=1 // pred_check_branch
      %37 = sbr.rel (0) target = $region17
    $region16: #{tpu_custom_call.1} parent=1 // pred_region
      %s39 = ssub.s32 1024, 1024
      %40 = vsyncadd [#allocation7], %s39
      %s41 = sshll.u32 [#allocation6], 4
      %s42 = int_to_ptr.vmem [resolvable:$true] %s41
      %47 = dma.hbm_to_vmem [thread:$0]  %s3, 1024, %s42, [#allocation7], 128, 128, 8
    $region17: #{tpu_custom_call.1} parent=1 // pred_fallthru
      _
    // Predicated region
    $region18: #{tpu_custom_call.1} parent=1 // pred_check
      _
    $region19: #{tpu_custom_call.1} parent=1 // pred_check_branch
      %49 = sbr.rel (0) target = $region21
    $region20: #{tpu_custom_call.1} parent=1 // pred_region
      _
    $region21: #{tpu_custom_call.1} parent=1 // pred_fallthru
      _
    // Predicated region
    $region22: #{tpu_custom_call.1} parent=1 // pred_check
      _
    $region23: #{tpu_custom_call.1} parent=1 // pred_check_branch
      %51 = sbr.rel (0) target = $region25
    $region24: #{tpu_custom_call.1} parent=1 // pred_region
      %s53 = ssub.s32 16, 16
      %54 = vsyncadd [#allocation7], %s53
      %s56 = sshll.u32 [#allocation8], 4
      %s57 = int_to_ptr.vmem [resolvable:$true] %s56
      %59 = dma.hbm_to_vmem [thread:$0]  %s5, 16, %s57, [#allocation7]
    $region25: #{tpu_custom_call.1} parent=1 // pred_fallthru
      _
    // Predicated region
    $region26: #{tpu_custom_call.1} parent=1 // pred_check
      _
    $region27: #{tpu_custom_call.1} parent=1 // pred_check_branch
      %61 = sbr.rel (0) target = $region29
    $region28: #{tpu_custom_call.1} parent=1 // pred_region
      %s63 = ssub.s32 512, 512
      %64 = vsyncadd [#allocation10], %s63
      %s65 = sshll.u32 [#allocation9], 4
      %s66 = int_to_ptr.vmem [resolvable:$true] %s65
      %71 = dma.hbm_to_vmem [thread:$0]  %s6, 512, %s66, [#allocation10], 128, 128, 8
    $region29: #{tpu_custom_call.1} parent=1 // pred_fallthru
      _
    // Predicated region
    $region30: #{tpu_custom_call.1} parent=1 // pred_check
      _
    $region31: #{tpu_custom_call.1} parent=1 // pred_check_branch
      %73 = sbr.rel (0) target = $region33
    $region32: #{tpu_custom_call.1} parent=1 // pred_region
      %s75 = ssub.s32 16, 16
      %76 = vsyncadd [#allocation10], %s75
      %s78 = sshll.u32 [#allocation11], 4
      %s79 = int_to_ptr.vmem [resolvable:$true] %s78
      %81 = dma.hbm_to_vmem [thread:$0]  %s7, 16, %s79, [#allocation10]
    $region33: #{tpu_custom_call.1} parent=1 // pred_fallthru
      _
    // Predicated region
    $region34: #{tpu_custom_call.1} parent=1 // pred_check
      _
    $region35: #{tpu_custom_call.1} parent=1 // pred_check_branch
      %83 = sbr.rel (0) target = $region37
    $region36: #{tpu_custom_call.1} parent=1 // pred_region
      %84 = dma.done [#allocation4], 64
    $region37: #{tpu_custom_call.1} parent=1 // pred_fallthru
      _
    // Predicated region
    $region38: #{tpu_custom_call.1} parent=1 // pred_check
      _
    $region39: #{tpu_custom_call.1} parent=1 // pred_check_branch
      %86 = sbr.rel (0) target = $region41
    $region40: #{tpu_custom_call.1} parent=1 // pred_region
      %87 = dma.done [#allocation7], 1024
    $region41: #{tpu_custom_call.1} parent=1 // pred_fallthru
      _
    // Predicated region
    $region42: #{tpu_custom_call.1} parent=1 // pred_check
      _
    $region43: #{tpu_custom_call.1} parent=1 // pred_check_branch
      %89 = sbr.rel (0) target = $region45
    $region44: #{tpu_custom_call.1} parent=1 // pred_region
      %90 = dma.done [#allocation7], 16
    $region45: #{tpu_custom_call.1} parent=1 // pred_fallthru
      _
    // Predicated region
    $region46: #{tpu_custom_call.1} parent=1 // pred_check
      _
    $region47: #{tpu_custom_call.1} parent=1 // pred_check_branch
      %92 = sbr.rel (0) target = $region49
    $region48: #{tpu_custom_call.1} parent=1 // pred_region
      %93 = dma.done [#allocation10], 512
    $region49: #{tpu_custom_call.1} parent=1 // pred_fallthru
      _
    // Predicated region
    $region50: #{tpu_custom_call.1} parent=1 // pred_check
      _
    $region51: #{tpu_custom_call.1} parent=1 // pred_check_branch
      %95 = sbr.rel (0) target = $region53
    $region52: #{tpu_custom_call.1} parent=1 // pred_region
      %96 = dma.done [#allocation10], 16
    $region53: #{tpu_custom_call.1} parent=1 // pred_fallthru
      _
    %v97 = vld [vmem:[#allocation3] sm:$0x3]
    %s98 = scalar_lea.vmem [#allocation3], 2
    %v99 = vld [vmem:[%s98] sm:$0x3]
    %101 = vrot.lane.b32.xlu0 %v99, 32
    %v102 = vpop.permute.xlu0 %101
    %vm104 = vcmask 261120
    %v105 = vsel %vm104, %v97, %v102
    %v106 = vld [vmem:[#allocation6] sm:$0xff]
    %v107 = vld [vmem:[#allocation6 + $0x8] sm:$0xff]
    %v108 = vld [vmem:[#allocation6 + $0x10] sm:$0xff]
    %v109 = vld [vmem:[#allocation6 + $0x18] sm:$0xff]
    %v110 = vld [vmem:[#allocation6 + $0x20] sm:$0xff]
    %v111 = vld [vmem:[#allocation6 + $0x28] sm:$0xff]
    %v112 = vld [vmem:[#allocation6 + $0x30] sm:$0xff]
    %v113 = vld [vmem:[#allocation6 + $0x38] sm:$0xff]
    %vm114 = vcmask 523264
    %v116 = vsel %vm114, %v105, 0
    %118 = vmatprep.subr.mxu0 0.0
    %119 = vmatpush1.msra.mxu0 %v106
    %120 = vmatprep.subr.mxu0 0.0
    %121 = vmatpush1.msra.mxu0 %v107
    %122 = vmatprep.subr.mxu0 0.0
    %123 = vmatpush1.msra.mxu0 %v108
    %124 = vmatprep.subr.mxu0 0.0
    %125 = vmatpush1.msra.mxu0 %v109
    %126 = vmatprep.subr.mxu0 0.0
    %127 = vmatpush1.msra.mxu0 %v110
    %128 = vmatprep.subr.mxu0 0.0
    %129 = vmatpush1.msra.mxu0 %v111
    %130 = vmatprep.subr.mxu0 0.0
    %131 = vmatpush1.msra.mxu0 %v112
    %132 = vmatprep.subr.mxu0 0.0
    %133 = vmatpush1.msra.mxu0 %v113
    %134 = vmatprep.subr.mxu0 0.0
    %135 = vmatpush1.msra.mxu0 0.0
    %136 = vmatprep.subr.mxu0 0.0
    %137 = vmatpush1.msra.mxu0 0.0
    %138 = vmatprep.subr.mxu0 0.0
    %139 = vmatpush1.msra.mxu0 0.0
    %140 = vmatprep.subr.mxu0 0.0
    %141 = vmatpush1.msra.mxu0 0.0
    %142 = vmatprep.subr.mxu0 0.0
    %143 = vmatpush1.msra.mxu0 0.0
    %144 = vmatprep.subr.mxu0 0.0
    %145 = vmatpush1.msra.mxu0 0.0
    %146 = vmatprep.subr.mxu0 0.0
    %147 = vmatpush1.msra.mxu0 0.0
    %148 = vmatprep.subr.mxu0 0.0
    %149 = vmatpush1.msra.mxu0 0.0
    %150 = vmatprep.subr.mxu0 0.0
    %151 = vmatpush1.msra.mxu0 0.0
    %152 = vmatprep.subr.mxu0 0.0
    %153 = vmatpush1.msra.mxu0 0.0
    %154 = vmatprep.subr.mxu0 0.0
    %155 = vmatpush1.msra.mxu0 0.0
    %156 = vmatprep.subr.mxu0 0.0
    %157 = vmatpush1.msra.mxu0 0.0
    %158 = vmatprep.subr.mxu0 0.0
    %159 = vmatpush1.msra.mxu0 0.0
    %160 = vmatprep.subr.mxu0 0.0
    %161 = vmatpush1.msra.mxu0 0.0
    %162 = vmatprep.subr.mxu0 0.0
    %163 = vmatpush1.msra.mxu0 0.0
    %164 = vmatprep.subr.mxu0 0.0
    %165 = vmatpush1.msra.mxu0 0.0
    %166 = vmatprep.subr.mxu0 0.0
    %167 = vmatpush1.msra.mxu0 0.0
    %168 = vmatprep.subr.mxu0 0.0
    %169 = vmatpush1.msra.mxu0 0.0
    %170 = vmatprep.subr.mxu0 0.0
    %171 = vmatpush1.msra.mxu0 0.0
    %172 = vmatprep.subr.mxu0 0.0
    %173 = vmatpush1.msra.mxu0 0.0
    %174 = vmatprep.subr.mxu0 0.0
    %175 = vmatpush1.msra.mxu0 0.0
    %176 = vmatprep.subr.mxu0 0.0
    %177 = vmatpush1.msra.mxu0 0.0
    %178 = vmatprep.subr.mxu0 0.0
    %179 = vmatpush1.msra.mxu0 0.0
    %180 = vmatprep.subr.mxu0 0.0
    %181 = vmatpush1.msra.mxu0 0.0
    %182 = vmatprep.mubr.f32.mxu0 0.0
    %183 = vmatmul.mubr.f32.gmra.mrb[0].mxu0 %v116
    %v184 = vpop.f32.mrb[0].mxu0
    %v185 = vadd.f32 0.0, %v184
    %v186 = vpop.f32.mrb[0].mxu0
    %187 = vdwg.mxu0
    %v188 = vld [vmem:[%s0] sm:$0x3]
    %v189 = vadd.f32 %v188, %v185
    %v190 = vtanh.pop %v189
    %v191 = vld [vmem:[%s4] sm:$0xff]
    %v192 = vld [vmem:[%s4 + $0x8] sm:$0xff]
    %v193 = vld [vmem:[%s4 + $0x10] sm:$0xff]
    %v194 = vld [vmem:[%s4 + $0x18] sm:$0xff]
    %v195 = vld [vmem:[#allocation8] sm:$0x1]
    %v197 = vlaneseq
    %v198 = vshrl.u32 %v197, 7
    %v199 = vsub.s32 0, %v198
    %v200 = vrot.slane %v195, %v199
    %v203 = vsel %vm104, %v190, 0
    %205 = vmatprep.subr.mxu0 0.0
    %206 = vmatpush1.msra.mxu0 %v191
    %207 = vmatprep.subr.mxu0 0.0
    %208 = vmatpush1.msra.mxu0 %v192
    %209 = vmatprep.subr.mxu0 0.0
    %210 = vmatpush1.msra.mxu0 %v193
    %211 = vmatprep.subr.mxu0 0.0
    %212 = vmatpush1.msra.mxu0 %v194
    %213 = vmatprep.subr.mxu0 0.0
    %214 = vmatpush1.msra.mxu0 0.0
    %215 = vmatprep.subr.mxu0 0.0
    %216 = vmatpush1.msra.mxu0 0.0
    %217 = vmatprep.subr.mxu0 0.0
    %218 = vmatpush1.msra.mxu0 0.0
    %219 = vmatprep.subr.mxu0 0.0
    %220 = vmatpush1.msra.mxu0 0.0
    %221 = vmatprep.subr.mxu0 0.0
    %222 = vmatpush1.msra.mxu0 0.0
    %223 = vmatprep.subr.mxu0 0.0
    %224 = vmatpush1.msra.mxu0 0.0
    %225 = vmatprep.subr.mxu0 0.0
    %226 = vmatpush1.msra.mxu0 0.0
    %227 = vmatprep.subr.mxu0 0.0
    %228 = vmatpush1.msra.mxu0 0.0
    %229 = vmatprep.subr.mxu0 0.0
    %230 = vmatpush1.msra.mxu0 0.0
    %231 = vmatprep.subr.mxu0 0.0
    %232 = vmatpush1.msra.mxu0 0.0
    %233 = vmatprep.subr.mxu0 0.0
    %234 = vmatpush1.msra.mxu0 0.0
    %235 = vmatprep.subr.mxu0 0.0
    %236 = vmatpush1.msra.mxu0 0.0
    %237 = vmatprep.subr.mxu0 0.0
    %238 = vmatpush1.msra.mxu0 0.0
    %239 = vmatprep.subr.mxu0 0.0
    %240 = vmatpush1.msra.mxu0 0.0
    %241 = vmatprep.subr.mxu0 0.0
    %242 = vmatpush1.msra.mxu0 0.0
    %243 = vmatprep.subr.mxu0 0.0
    %244 = vmatpush1.msra.mxu0 0.0
    %245 = vmatprep.subr.mxu0 0.0
    %246 = vmatpush1.msra.mxu0 0.0
    %247 = vmatprep.subr.mxu0 0.0
    %248 = vmatpush1.msra.mxu0 0.0
    %249 = vmatprep.subr.mxu0 0.0
    %250 = vmatpush1.msra.mxu0 0.0
    %251 = vmatprep.subr.mxu0 0.0
    %252 = vmatpush1.msra.mxu0 0.0
    %253 = vmatprep.subr.mxu0 0.0
    %254 = vmatpush1.msra.mxu0 0.0
    %255 = vmatprep.subr.mxu0 0.0
    %256 = vmatpush1.msra.mxu0 0.0
    %257 = vmatprep.subr.mxu0 0.0
    %258 = vmatpush1.msra.mxu0 0.0
    %259 = vmatprep.subr.mxu0 0.0
    %260 = vmatpush1.msra.mxu0 0.0
    %261 = vmatprep.subr.mxu0 0.0
    %262 = vmatpush1.msra.mxu0 0.0
    %263 = vmatprep.subr.mxu0 0.0
    %264 = vmatpush1.msra.mxu0 0.0
    %265 = vmatprep.subr.mxu0 0.0
    %266 = vmatpush1.msra.mxu0 0.0
    %267 = vmatprep.subr.mxu0 0.0
    %268 = vmatpush1.msra.mxu0 0.0
    %269 = vmatprep.mubr.f32.mxu0 0.0
    %270 = vmatmul.mubr.f32.gmra.mrb[0].mxu0 %v203
    %v271 = vpop.f32.mrb[0].mxu0
    %v272 = vadd.f32 %v200, %v271
    %v273 = vpop.f32.mrb[0].mxu0
    %274 = vdwg.mxu0
    %276 = vrot.lane.b32.xlu0 %v185, 96
    %v277 = vpop.permute.xlu0 %276
    %v279 = vadd.f32 %v272, %v277
    %v280 = vtanh.pop %v279
    %v281 = vld [vmem:[%s1] sm:$0x3]
    %283 = vrot.lane.b32.xlu0 %v280, 32
    %v284 = vpop.permute.xlu0 %283
    %v286 = vsel %vm104, %v190, %v284
    %v287 = vsub.f32 %v286, %v105
    %289 = vset.pattern.permute.xlu0 0
    %290 = vperm.xlu0 %289, %v281
    %v291 = vpop.permute.xlu0 %290
    %v293 = vmul.f32 %v291, %v287
    %v294 = vadd.f32 %v105, %v293
    %v295 = vmul.f32 %v280, %v291
    %vm296 = vcmask 254976
    %297 = vst.msk [vmem:[#allocation2] sm:$0x3] %vm296, %v295
    %v298 = vld [vmem:[#allocation6] sm:$0xff]
    %v299 = vld [vmem:[#allocation6 + $0x8] sm:$0xff]
    %v300 = vld [vmem:[#allocation6 + $0x10] sm:$0xff]
    %v301 = vld [vmem:[#allocation6 + $0x18] sm:$0xff]
    %v302 = vld [vmem:[#allocation6 + $0x20] sm:$0xff]
    %v303 = vld [vmem:[#allocation6 + $0x28] sm:$0xff]
    %v304 = vld [vmem:[#allocation6 + $0x30] sm:$0xff]
    %v305 = vld [vmem:[#allocation6 + $0x38] sm:$0xff]
    %v307 = vsel %vm114, %v294, 0
    %309 = vmatprep.subr.mxu0 0.0
    %310 = vmatpush1.msra.mxu0 %v298
    %311 = vmatprep.subr.mxu0 0.0
    %312 = vmatpush1.msra.mxu0 %v299
    %313 = vmatprep.subr.mxu0 0.0
    %314 = vmatpush1.msra.mxu0 %v300
    %315 = vmatprep.subr.mxu0 0.0
    %316 = vmatpush1.msra.mxu0 %v301
    %317 = vmatprep.subr.mxu0 0.0
    %318 = vmatpush1.msra.mxu0 %v302
    %319 = vmatprep.subr.mxu0 0.0
    %320 = vmatpush1.msra.mxu0 %v303
    %321 = vmatprep.subr.mxu0 0.0
    %322 = vmatpush1.msra.mxu0 %v304
    %323 = vmatprep.subr.mxu0 0.0
    %324 = vmatpush1.msra.mxu0 %v305
    %325 = vmatprep.subr.mxu0 0.0
    %326 = vmatpush1.msra.mxu0 0.0
    %327 = vmatprep.subr.mxu0 0.0
    %328 = vmatpush1.msra.mxu0 0.0
    %329 = vmatprep.subr.mxu0 0.0
    %330 = vmatpush1.msra.mxu0 0.0
    %331 = vmatprep.subr.mxu0 0.0
    %332 = vmatpush1.msra.mxu0 0.0
    %333 = vmatprep.subr.mxu0 0.0
    %334 = vmatpush1.msra.mxu0 0.0
    %335 = vmatprep.subr.mxu0 0.0
    %336 = vmatpush1.msra.mxu0 0.0
    %337 = vmatprep.subr.mxu0 0.0
    %338 = vmatpush1.msra.mxu0 0.0
    %339 = vmatprep.subr.mxu0 0.0
    %340 = vmatpush1.msra.mxu0 0.0
    %341 = vmatprep.subr.mxu0 0.0
    %342 = vmatpush1.msra.mxu0 0.0
    %343 = vmatprep.subr.mxu0 0.0
    %344 = vmatpush1.msra.mxu0 0.0
    %345 = vmatprep.subr.mxu0 0.0
    %346 = vmatpush1.msra.mxu0 0.0
    %347 = vmatprep.subr.mxu0 0.0
    %348 = vmatpush1.msra.mxu0 0.0
    %349 = vmatprep.subr.mxu0 0.0
    %350 = vmatpush1.msra.mxu0 0.0
    %351 = vmatprep.subr.mxu0 0.0
    %352 = vmatpush1.msra.mxu0 0.0
    %353 = vmatprep.subr.mxu0 0.0
    %354 = vmatpush1.msra.mxu0 0.0
    %355 = vmatprep.subr.mxu0 0.0
    %356 = vmatpush1.msra.mxu0 0.0
    %357 = vmatprep.subr.mxu0 0.0
    %358 = vmatpush1.msra.mxu0 0.0
    %359 = vmatprep.subr.mxu0 0.0
    %360 = vmatpush1.msra.mxu0 0.0
    %361 = vmatprep.subr.mxu0 0.0
    %362 = vmatpush1.msra.mxu0 0.0
    %363 = vmatprep.subr.mxu0 0.0
    %364 = vmatpush1.msra.mxu0 0.0
    %365 = vmatprep.subr.mxu0 0.0
    %366 = vmatpush1.msra.mxu0 0.0
    %367 = vmatprep.subr.mxu0 0.0
    %368 = vmatpush1.msra.mxu0 0.0
    %369 = vmatprep.subr.mxu0 0.0
    %370 = vmatpush1.msra.mxu0 0.0
    %371 = vmatprep.subr.mxu0 0.0
    %372 = vmatpush1.msra.mxu0 0.0
    %373 = vmatprep.mubr.f32.mxu0 0.0
    %374 = vmatmul.mubr.f32.gmra.mrb[0].mxu0 %v307
    %v375 = vpop.f32.mrb[0].mxu0
    %v376 = vadd.f32 0.0, %v375
    %v377 = vpop.f32.mrb[0].mxu0
    %378 = vdwg.mxu0
    %s379 = scalar_lea.vmem %s0, 2
    %v380 = vld [vmem:[%s379] sm:$0x3]
    %v381 = vadd.f32 %v380, %v376
    %v382 = vtanh.pop %v381
    %v383 = vld [vmem:[%s4] sm:$0xff]
    %v384 = vld [vmem:[%s4 + $0x8] sm:$0xff]
    %v385 = vld [vmem:[%s4 + $0x10] sm:$0xff]
    %v386 = vld [vmem:[%s4 + $0x18] sm:$0xff]
    %v387 = vld [vmem:[#allocation8] sm:$0x1]
    %v389 = vlaneseq
    %v390 = vshrl.u32 %v389, 7
    %v391 = vsub.s32 0, %v390
    %v392 = vrot.slane %v387, %v391
    %v395 = vsel %vm104, %v382, 0
    %397 = vmatprep.subr.mxu0 0.0
    %398 = vmatpush1.msra.mxu0 %v383
    %399 = vmatprep.subr.mxu0 0.0
    %400 = vmatpush1.msra.mxu0 %v384
    %401 = vmatprep.subr.mxu0 0.0
    %402 = vmatpush1.msra.mxu0 %v385
    %403 = vmatprep.subr.mxu0 0.0
    %404 = vmatpush1.msra.mxu0 %v386
    %405 = vmatprep.subr.mxu0 0.0
    %406 = vmatpush1.msra.mxu0 0.0
    %407 = vmatprep.subr.mxu0 0.0
    %408 = vmatpush1.msra.mxu0 0.0
    %409 = vmatprep.subr.mxu0 0.0
    %410 = vmatpush1.msra.mxu0 0.0
    %411 = vmatprep.subr.mxu0 0.0
    %412 = vmatpush1.msra.mxu0 0.0
    %413 = vmatprep.subr.mxu0 0.0
    %414 = vmatpush1.msra.mxu0 0.0
    %415 = vmatprep.subr.mxu0 0.0
    %416 = vmatpush1.msra.mxu0 0.0
    %417 = vmatprep.subr.mxu0 0.0
    %418 = vmatpush1.msra.mxu0 0.0
    %419 = vmatprep.subr.mxu0 0.0
    %420 = vmatpush1.msra.mxu0 0.0
    %421 = vmatprep.subr.mxu0 0.0
    %422 = vmatpush1.msra.mxu0 0.0
    %423 = vmatprep.subr.mxu0 0.0
    %424 = vmatpush1.msra.mxu0 0.0
    %425 = vmatprep.subr.mxu0 0.0
    %426 = vmatpush1.msra.mxu0 0.0
    %427 = vmatprep.subr.mxu0 0.0
    %428 = vmatpush1.msra.mxu0 0.0
    %429 = vmatprep.subr.mxu0 0.0
    %430 = vmatpush1.msra.mxu0 0.0
    %431 = vmatprep.subr.mxu0 0.0
    %432 = vmatpush1.msra.mxu0 0.0
    %433 = vmatprep.subr.mxu0 0.0
    %434 = vmatpush1.msra.mxu0 0.0
    %435 = vmatprep.subr.mxu0 0.0
    %436 = vmatpush1.msra.mxu0 0.0
    %437 = vmatprep.subr.mxu0 0.0
    %438 = vmatpush1.msra.mxu0 0.0
    %439 = vmatprep.subr.mxu0 0.0
    %440 = vmatpush1.msra.mxu0 0.0
    %441 = vmatprep.subr.mxu0 0.0
    %442 = vmatpush1.msra.mxu0 0.0
    %443 = vmatprep.subr.mxu0 0.0
    %444 = vmatpush1.msra.mxu0 0.0
    %445 = vmatprep.subr.mxu0 0.0
    %446 = vmatpush1.msra.mxu0 0.0
    %447 = vmatprep.subr.mxu0 0.0
    %448 = vmatpush1.msra.mxu0 0.0
    %449 = vmatprep.subr.mxu0 0.0
    %450 = vmatpush1.msra.mxu0 0.0
    %451 = vmatprep.subr.mxu0 0.0
    %452 = vmatpush1.msra.mxu0 0.0
    %453 = vmatprep.subr.mxu0 0.0
    %454 = vmatpush1.msra.mxu0 0.0
    %455 = vmatprep.subr.mxu0 0.0
    %456 = vmatpush1.msra.mxu0 0.0
    %457 = vmatprep.subr.mxu0 0.0
    %458 = vmatpush1.msra.mxu0 0.0
    %459 = vmatprep.subr.mxu0 0.0
    %460 = vmatpush1.msra.mxu0 0.0
    %461 = vmatprep.mubr.f32.mxu0 0.0
    %462 = vmatmul.mubr.f32.gmra.mrb[0].mxu0 %v395
    %v463 = vpop.f32.mrb[0].mxu0
    %v464 = vadd.f32 %v392, %v463
    %v465 = vpop.f32.mrb[0].mxu0
    %466 = vdwg.mxu0
    %468 = vrot.lane.b32.xlu0 %v376, 96
    %v469 = vpop.permute.xlu0 %468
    %v471 = vadd.f32 %v464, %v469
    %v472 = vtanh.pop %v471
    %s473 = scalar_lea.vmem %s1, 2
    %v474 = vld [vmem:[%s473] sm:$0x3]
    %476 = vrot.lane.b32.xlu0 %v472, 32
    %v477 = vpop.permute.xlu0 %476
    %v479 = vsel %vm104, %v382, %v477
    %v480 = vsub.f32 %v479, %v294
    %482 = vset.pattern.permute.xlu0 0
    %483 = vperm.xlu0 %482, %v474
    %v484 = vpop.permute.xlu0 %483
    %v486 = vmul.f32 %v484, %v480
    %v487 = vadd.f32 %v294, %v486
    %v488 = vmul.f32 %v472, %v484
    %489 = vst.msk [vmem:[#allocation2 + $0x2] sm:$0x3] %vm296, %v488
    %v490 = vld [vmem:[#allocation6] sm:$0xff]
    %v491 = vld [vmem:[#allocation6 + $0x8] sm:$0xff]
    %v492 = vld [vmem:[#allocation6 + $0x10] sm:$0xff]
    %v493 = vld [vmem:[#allocation6 + $0x18] sm:$0xff]
    %v494 = vld [vmem:[#allocation6 + $0x20] sm:$0xff]
    %v495 = vld [vmem:[#allocation6 + $0x28] sm:$0xff]
    %v496 = vld [vmem:[#allocation6 + $0x30] sm:$0xff]
    %v497 = vld [vmem:[#allocation6 + $0x38] sm:$0xff]
    %v499 = vsel %vm114, %v487, 0
    %501 = vmatprep.subr.mxu0 0.0
    %502 = vmatpush1.msra.mxu0 %v490
    %503 = vmatprep.subr.mxu0 0.0
    %504 = vmatpush1.msra.mxu0 %v491
    %505 = vmatprep.subr.mxu0 0.0
    %506 = vmatpush1.msra.mxu0 %v492
    %507 = vmatprep.subr.mxu0 0.0
    %508 = vmatpush1.msra.mxu0 %v493
    %509 = vmatprep.subr.mxu0 0.0
    %510 = vmatpush1.msra.mxu0 %v494
    %511 = vmatprep.subr.mxu0 0.0
    %512 = vmatpush1.msra.mxu0 %v495
    %513 = vmatprep.subr.mxu0 0.0
    %514 = vmatpush1.msra.mxu0 %v496
    %515 = vmatprep.subr.mxu0 0.0
    %516 = vmatpush1.msra.mxu0 %v497
    %517 = vmatprep.subr.mxu0 0.0
    %518 = vmatpush1.msra.mxu0 0.0
    %519 = vmatprep.subr.mxu0 0.0
    %520 = vmatpush1.msra.mxu0 0.0
    %521 = vmatprep.subr.mxu0 0.0
    %522 = vmatpush1.msra.mxu0 0.0
    %523 = vmatprep.subr.mxu0 0.0
    %524 = vmatpush1.msra.mxu0 0.0
    %525 = vmatprep.subr.mxu0 0.0
    %526 = vmatpush1.msra.mxu0 0.0
    %527 = vmatprep.subr.mxu0 0.0
    %528 = vmatpush1.msra.mxu0 0.0
    %529 = vmatprep.subr.mxu0 0.0
    %530 = vmatpush1.msra.mxu0 0.0
    %531 = vmatprep.subr.mxu0 0.0
    %532 = vmatpush1.msra.mxu0 0.0
    %533 = vmatprep.subr.mxu0 0.0
    %534 = vmatpush1.msra.mxu0 0.0
    %535 = vmatprep.subr.mxu0 0.0
    %536 = vmatpush1.msra.mxu0 0.0
    %537 = vmatprep.subr.mxu0 0.0
    %538 = vmatpush1.msra.mxu0 0.0
    %539 = vmatprep.subr.mxu0 0.0
    %540 = vmatpush1.msra.mxu0 0.0
    %541 = vmatprep.subr.mxu0 0.0
    %542 = vmatpush1.msra.mxu0 0.0
    %543 = vmatprep.subr.mxu0 0.0
    %544 = vmatpush1.msra.mxu0 0.0
    %545 = vmatprep.subr.mxu0 0.0
    %546 = vmatpush1.msra.mxu0 0.0
    %547 = vmatprep.subr.mxu0 0.0
    %548 = vmatpush1.msra.mxu0 0.0
    %549 = vmatprep.subr.mxu0 0.0
    %550 = vmatpush1.msra.mxu0 0.0
    %551 = vmatprep.subr.mxu0 0.0
    %552 = vmatpush1.msra.mxu0 0.0
    %553 = vmatprep.subr.mxu0 0.0
    %554 = vmatpush1.msra.mxu0 0.0
    %555 = vmatprep.subr.mxu0 0.0
    %556 = vmatpush1.msra.mxu0 0.0
    %557 = vmatprep.subr.mxu0 0.0
    %558 = vmatpush1.msra.mxu0 0.0
    %559 = vmatprep.subr.mxu0 0.0
    %560 = vmatpush1.msra.mxu0 0.0
    %561 = vmatprep.subr.mxu0 0.0
    %562 = vmatpush1.msra.mxu0 0.0
    %563 = vmatprep.subr.mxu0 0.0
    %564 = vmatpush1.msra.mxu0 0.0
    %565 = vmatprep.mubr.f32.mxu0 0.0
    %566 = vmatmul.mubr.f32.gmra.mrb[0].mxu0 %v499
    %v567 = vpop.f32.mrb[0].mxu0
    %v568 = vadd.f32 0.0, %v567
    %v569 = vpop.f32.mrb[0].mxu0
    %570 = vdwg.mxu0
    %s571 = scalar_lea.vmem %s0, 4
    %v572 = vld [vmem:[%s571] sm:$0x3]
    %v573 = vadd.f32 %v572, %v568
    %v574 = vtanh.pop %v573
    %v575 = vld [vmem:[%s4] sm:$0xff]
    %v576 = vld [vmem:[%s4 + $0x8] sm:$0xff]
    %v577 = vld [vmem:[%s4 + $0x10] sm:$0xff]
    %v578 = vld [vmem:[%s4 + $0x18] sm:$0xff]
    %v579 = vld [vmem:[#allocation8] sm:$0x1]
    %v581 = vlaneseq
    %v582 = vshrl.u32 %v581, 7
    %v583 = vsub.s32 0, %v582
    %v584 = vrot.slane %v579, %v583
    %v587 = vsel %vm104, %v574, 0
    %589 = vmatprep.subr.mxu0 0.0
    %590 = vmatpush1.msra.mxu0 %v575
    %591 = vmatprep.subr.mxu0 0.0
    %592 = vmatpush1.msra.mxu0 %v576
    %593 = vmatprep.subr.mxu0 0.0
    %594 = vmatpush1.msra.mxu0 %v577
    %595 = vmatprep.subr.mxu0 0.0
    %596 = vmatpush1.msra.mxu0 %v578
    %597 = vmatprep.subr.mxu0 0.0
    %598 = vmatpush1.msra.mxu0 0.0
    %599 = vmatprep.subr.mxu0 0.0
    %600 = vmatpush1.msra.mxu0 0.0
    %601 = vmatprep.subr.mxu0 0.0
    %602 = vmatpush1.msra.mxu0 0.0
    %603 = vmatprep.subr.mxu0 0.0
    %604 = vmatpush1.msra.mxu0 0.0
    %605 = vmatprep.subr.mxu0 0.0
    %606 = vmatpush1.msra.mxu0 0.0
    %607 = vmatprep.subr.mxu0 0.0
    %608 = vmatpush1.msra.mxu0 0.0
    %609 = vmatprep.subr.mxu0 0.0
    %610 = vmatpush1.msra.mxu0 0.0
    %611 = vmatprep.subr.mxu0 0.0
    %612 = vmatpush1.msra.mxu0 0.0
    %613 = vmatprep.subr.mxu0 0.0
    %614 = vmatpush1.msra.mxu0 0.0
    %615 = vmatprep.subr.mxu0 0.0
    %616 = vmatpush1.msra.mxu0 0.0
    %617 = vmatprep.subr.mxu0 0.0
    %618 = vmatpush1.msra.mxu0 0.0
    %619 = vmatprep.subr.mxu0 0.0
    %620 = vmatpush1.msra.mxu0 0.0
    %621 = vmatprep.subr.mxu0 0.0
    %622 = vmatpush1.msra.mxu0 0.0
    %623 = vmatprep.subr.mxu0 0.0
    %624 = vmatpush1.msra.mxu0 0.0
    %625 = vmatprep.subr.mxu0 0.0
    %626 = vmatpush1.msra.mxu0 0.0
    %627 = vmatprep.subr.mxu0 0.0
    %628 = vmatpush1.msra.mxu0 0.0
    %629 = vmatprep.subr.mxu0 0.0
    %630 = vmatpush1.msra.mxu0 0.0
    %631 = vmatprep.subr.mxu0 0.0
    %632 = vmatpush1.msra.mxu0 0.0
    %633 = vmatprep.subr.mxu0 0.0
    %634 = vmatpush1.msra.mxu0 0.0
    %635 = vmatprep.subr.mxu0 0.0
    %636 = vmatpush1.msra.mxu0 0.0
    %637 = vmatprep.subr.mxu0 0.0
    %638 = vmatpush1.msra.mxu0 0.0
    %639 = vmatprep.subr.mxu0 0.0
    %640 = vmatpush1.msra.mxu0 0.0
    %641 = vmatprep.subr.mxu0 0.0
    %642 = vmatpush1.msra.mxu0 0.0
    %643 = vmatprep.subr.mxu0 0.0
    %644 = vmatpush1.msra.mxu0 0.0
    %645 = vmatprep.subr.mxu0 0.0
    %646 = vmatpush1.msra.mxu0 0.0
    %647 = vmatprep.subr.mxu0 0.0
    %648 = vmatpush1.msra.mxu0 0.0
    %649 = vmatprep.subr.mxu0 0.0
    %650 = vmatpush1.msra.mxu0 0.0
    %651 = vmatprep.subr.mxu0 0.0
    %652 = vmatpush1.msra.mxu0 0.0
    %653 = vmatprep.mubr.f32.mxu0 0.0
    %654 = vmatmul.mubr.f32.gmra.mrb[0].mxu0 %v587
    %v655 = vpop.f32.mrb[0].mxu0
    %v656 = vadd.f32 %v584, %v655
    %v657 = vpop.f32.mrb[0].mxu0
    %658 = vdwg.mxu0
    %660 = vrot.lane.b32.xlu0 %v568, 96
    %v661 = vpop.permute.xlu0 %660
    %v663 = vadd.f32 %v656, %v661
    %v664 = vtanh.pop %v663
    %s665 = scalar_lea.vmem %s1, 4
    %v666 = vld [vmem:[%s665] sm:$0x3]
    %668 = vrot.lane.b32.xlu0 %v664, 32
    %v669 = vpop.permute.xlu0 %668
    %v671 = vsel %vm104, %v574, %v669
    %v672 = vsub.f32 %v671, %v487
    %674 = vset.pattern.permute.xlu0 0
    %675 = vperm.xlu0 %674, %v666
    %v676 = vpop.permute.xlu0 %675
    %v678 = vmul.f32 %v676, %v672
    %v679 = vadd.f32 %v487, %v678
    %v680 = vmul.f32 %v664, %v676
    %681 = vst.msk [vmem:[#allocation2 + $0x4] sm:$0x3] %vm296, %v680
    %v682 = vld [vmem:[#allocation6] sm:$0xff]
    %v683 = vld [vmem:[#allocation6 + $0x8] sm:$0xff]
    %v684 = vld [vmem:[#allocation6 + $0x10] sm:$0xff]
    %v685 = vld [vmem:[#allocation6 + $0x18] sm:$0xff]
    %v686 = vld [vmem:[#allocation6 + $0x20] sm:$0xff]
    %v687 = vld [vmem:[#allocation6 + $0x28] sm:$0xff]
    %v688 = vld [vmem:[#allocation6 + $0x30] sm:$0xff]
    %v689 = vld [vmem:[#allocation6 + $0x38] sm:$0xff]
    %v691 = vsel %vm114, %v679, 0
    %693 = vmatprep.subr.mxu0 0.0
    %694 = vmatpush1.msra.mxu0 %v682
    %695 = vmatprep.subr.mxu0 0.0
    %696 = vmatpush1.msra.mxu0 %v683
    %697 = vmatprep.subr.mxu0 0.0
    %698 = vmatpush1.msra.mxu0 %v684
    %699 = vmatprep.subr.mxu0 0.0
    %700 = vmatpush1.msra.mxu0 %v685
    %701 = vmatprep.subr.mxu0 0.0
    %702 = vmatpush1.msra.mxu0 %v686
    %703 = vmatprep.subr.mxu0 0.0
    %704 = vmatpush1.msra.mxu0 %v687
    %705 = vmatprep.subr.mxu0 0.0
    %706 = vmatpush1.msra.mxu0 %v688
    %707 = vmatprep.subr.mxu0 0.0
    %708 = vmatpush1.msra.mxu0 %v689
    %709 = vmatprep.subr.mxu0 0.0
    %710 = vmatpush1.msra.mxu0 0.0
    %711 = vmatprep.subr.mxu0 0.0
    %712 = vmatpush1.msra.mxu0 0.0
    %713 = vmatprep.subr.mxu0 0.0
    %714 = vmatpush1.msra.mxu0 0.0
    %715 = vmatprep.subr.mxu0 0.0
    %716 = vmatpush1.msra.mxu0 0.0
    %717 = vmatprep.subr.mxu0 0.0
    %718 = vmatpush1.msra.mxu0 0.0
    %719 = vmatprep.subr.mxu0 0.0
    %720 = vmatpush1.msra.mxu0 0.0
    %721 = vmatprep.subr.mxu0 0.0
    %722 = vmatpush1.msra.mxu0 0.0
    %723 = vmatprep.subr.mxu0 0.0
    %724 = vmatpush1.msra.mxu0 0.0
    %725 = vmatprep.subr.mxu0 0.0
    %726 = vmatpush1.msra.mxu0 0.0
    %727 = vmatprep.subr.mxu0 0.0
    %728 = vmatpush1.msra.mxu0 0.0
    %729 = vmatprep.subr.mxu0 0.0
    %730 = vmatpush1.msra.mxu0 0.0
    %731 = vmatprep.subr.mxu0 0.0
    %732 = vmatpush1.msra.mxu0 0.0
    %733 = vmatprep.subr.mxu0 0.0
    %734 = vmatpush1.msra.mxu0 0.0
    %735 = vmatprep.subr.mxu0 0.0
    %736 = vmatpush1.msra.mxu0 0.0
    %737 = vmatprep.subr.mxu0 0.0
    %738 = vmatpush1.msra.mxu0 0.0
    %739 = vmatprep.subr.mxu0 0.0
    %740 = vmatpush1.msra.mxu0 0.0
    %741 = vmatprep.subr.mxu0 0.0
    %742 = vmatpush1.msra.mxu0 0.0
    %743 = vmatprep.subr.mxu0 0.0
    %744 = vmatpush1.msra.mxu0 0.0
    %745 = vmatprep.subr.mxu0 0.0
    %746 = vmatpush1.msra.mxu0 0.0
    %747 = vmatprep.subr.mxu0 0.0
    %748 = vmatpush1.msra.mxu0 0.0
    %749 = vmatprep.subr.mxu0 0.0
    %750 = vmatpush1.msra.mxu0 0.0
    %751 = vmatprep.subr.mxu0 0.0
    %752 = vmatpush1.msra.mxu0 0.0
    %753 = vmatprep.subr.mxu0 0.0
    %754 = vmatpush1.msra.mxu0 0.0
    %755 = vmatprep.subr.mxu0 0.0
    %756 = vmatpush1.msra.mxu0 0.0
    %757 = vmatprep.mubr.f32.mxu0 0.0
    %758 = vmatmul.mubr.f32.gmra.mrb[0].mxu0 %v691
    %v759 = vpop.f32.mrb[0].mxu0
    %v760 = vadd.f32 0.0, %v759
    %v761 = vpop.f32.mrb[0].mxu0
    %762 = vdwg.mxu0
    %s763 = scalar_lea.vmem %s0, 6
    %v764 = vld [vmem:[%s763] sm:$0x3]
    %v765 = vadd.f32 %v764, %v760
    %v766 = vtanh.pop %v765
    %v767 = vld [vmem:[%s4] sm:$0xff]
    %v768 = vld [vmem:[%s4 + $0x8] sm:$0xff]
    %v769 = vld [vmem:[%s4 + $0x10] sm:$0xff]
    %v770 = vld [vmem:[%s4 + $0x18] sm:$0xff]
    %v771 = vld [vmem:[#allocation8] sm:$0x1]
    %v773 = vlaneseq
    %v774 = vshrl.u32 %v773, 7
    %v775 = vsub.s32 0, %v774
    %v776 = vrot.slane %v771, %v775
    %v779 = vsel %vm104, %v766, 0
    %781 = vmatprep.subr.mxu0 0.0
    %782 = vmatpush1.msra.mxu0 %v767
    %783 = vmatprep.subr.mxu0 0.0
    %784 = vmatpush1.msra.mxu0 %v768
    %785 = vmatprep.subr.mxu0 0.0
    %786 = vmatpush1.msra.mxu0 %v769
    %787 = vmatprep.subr.mxu0 0.0
    %788 = vmatpush1.msra.mxu0 %v770
    %789 = vmatprep.subr.mxu0 0.0
    %790 = vmatpush1.msra.mxu0 0.0
    %791 = vmatprep.subr.mxu0 0.0
    %792 = vmatpush1.msra.mxu0 0.0
    %793 = vmatprep.subr.mxu0 0.0
    %794 = vmatpush1.msra.mxu0 0.0
    %795 = vmatprep.subr.mxu0 0.0
    %796 = vmatpush1.msra.mxu0 0.0
    %797 = vmatprep.subr.mxu0 0.0
    %798 = vmatpush1.msra.mxu0 0.0
    %799 = vmatprep.subr.mxu0 0.0
    %800 = vmatpush1.msra.mxu0 0.0
    %801 = vmatprep.subr.mxu0 0.0
    %802 = vmatpush1.msra.mxu0 0.0
    %803 = vmatprep.subr.mxu0 0.0
    %804 = vmatpush1.msra.mxu0 0.0
    %805 = vmatprep.subr.mxu0 0.0
    %806 = vmatpush1.msra.mxu0 0.0
    %807 = vmatprep.subr.mxu0 0.0
    %808 = vmatpush1.msra.mxu0 0.0
    %809 = vmatprep.subr.mxu0 0.0
    %810 = vmatpush1.msra.mxu0 0.0
    %811 = vmatprep.subr.mxu0 0.0
    %812 = vmatpush1.msra.mxu0 0.0
    %813 = vmatprep.subr.mxu0 0.0
    %814 = vmatpush1.msra.mxu0 0.0
    %815 = vmatprep.subr.mxu0 0.0
    %816 = vmatpush1.msra.mxu0 0.0
    %817 = vmatprep.subr.mxu0 0.0
    %818 = vmatpush1.msra.mxu0 0.0
    %819 = vmatprep.subr.mxu0 0.0
    %820 = vmatpush1.msra.mxu0 0.0
    %821 = vmatprep.subr.mxu0 0.0
    %822 = vmatpush1.msra.mxu0 0.0
    %823 = vmatprep.subr.mxu0 0.0
    %824 = vmatpush1.msra.mxu0 0.0
    %825 = vmatprep.subr.mxu0 0.0
    %826 = vmatpush1.msra.mxu0 0.0
    %827 = vmatprep.subr.mxu0 0.0
    %828 = vmatpush1.msra.mxu0 0.0
    %829 = vmatprep.subr.mxu0 0.0
    %830 = vmatpush1.msra.mxu0 0.0
    %831 = vmatprep.subr.mxu0 0.0
    %832 = vmatpush1.msra.mxu0 0.0
    %833 = vmatprep.subr.mxu0 0.0
    %834 = vmatpush1.msra.mxu0 0.0
    %835 = vmatprep.subr.mxu0 0.0
    %836 = vmatpush1.msra.mxu0 0.0
    %837 = vmatprep.subr.mxu0 0.0
    %838 = vmatpush1.msra.mxu0 0.0
    %839 = vmatprep.subr.mxu0 0.0
    %840 = vmatpush1.msra.mxu0 0.0
    %841 = vmatprep.subr.mxu0 0.0
    %842 = vmatpush1.msra.mxu0 0.0
    %843 = vmatprep.subr.mxu0 0.0
    %844 = vmatpush1.msra.mxu0 0.0
    %845 = vmatprep.mubr.f32.mxu0 0.0
    %846 = vmatmul.mubr.f32.gmra.mrb[0].mxu0 %v779
    %v847 = vpop.f32.mrb[0].mxu0
    %v848 = vadd.f32 %v776, %v847
    %v849 = vpop.f32.mrb[0].mxu0
    %850 = vdwg.mxu0
    %852 = vrot.lane.b32.xlu0 %v760, 96
    %v853 = vpop.permute.xlu0 %852
    %v855 = vadd.f32 %v848, %v853
    %v856 = vtanh.pop %v855
    %s857 = scalar_lea.vmem %s1, 6
    %v858 = vld [vmem:[%s857] sm:$0x3]
    %860 = vrot.lane.b32.xlu0 %v856, 32
    %v861 = vpop.permute.xlu0 %860
    %v863 = vsel %vm104, %v766, %v861
    %v864 = vsub.f32 %v863, %v679
    %866 = vset.pattern.permute.xlu0 0
    %867 = vperm.xlu0 %866, %v858
    %v868 = vpop.permute.xlu0 %867
    %v870 = vmul.f32 %v868, %v864
    %v871 = vadd.f32 %v679, %v870
    %v872 = vmul.f32 %v856, %v868
    %873 = vst.msk [vmem:[#allocation2 + $0x6] sm:$0x3] %vm296, %v872
    %v874 = vld [vmem:[#allocation6] sm:$0xff]
    %v875 = vld [vmem:[#allocation6 + $0x8] sm:$0xff]
    %v876 = vld [vmem:[#allocation6 + $0x10] sm:$0xff]
    %v877 = vld [vmem:[#allocation6 + $0x18] sm:$0xff]
    %v878 = vld [vmem:[#allocation6 + $0x20] sm:$0xff]
    %v879 = vld [vmem:[#allocation6 + $0x28] sm:$0xff]
    %v880 = vld [vmem:[#allocation6 + $0x30] sm:$0xff]
    %v881 = vld [vmem:[#allocation6 + $0x38] sm:$0xff]
    %v883 = vsel %vm114, %v871, 0
    %885 = vmatprep.subr.mxu0 0.0
    %886 = vmatpush1.msra.mxu0 %v874
    %887 = vmatprep.subr.mxu0 0.0
    %888 = vmatpush1.msra.mxu0 %v875
    %889 = vmatprep.subr.mxu0 0.0
    %890 = vmatpush1.msra.mxu0 %v876
    %891 = vmatprep.subr.mxu0 0.0
    %892 = vmatpush1.msra.mxu0 %v877
    %893 = vmatprep.subr.mxu0 0.0
    %894 = vmatpush1.msra.mxu0 %v878
    %895 = vmatprep.subr.mxu0 0.0
    %896 = vmatpush1.msra.mxu0 %v879
    %897 = vmatprep.subr.mxu0 0.0
    %898 = vmatpush1.msra.mxu0 %v880
    %899 = vmatprep.subr.mxu0 0.0
    %900 = vmatpush1.msra.mxu0 %v881
    %901 = vmatprep.subr.mxu0 0.0
    %902 = vmatpush1.msra.mxu0 0.0
    %903 = vmatprep.subr.mxu0 0.0
    %904 = vmatpush1.msra.mxu0 0.0
    %905 = vmatprep.subr.mxu0 0.0
    %906 = vmatpush1.msra.mxu0 0.0
    %907 = vmatprep.subr.mxu0 0.0
    %908 = vmatpush1.msra.mxu0 0.0
    %909 = vmatprep.subr.mxu0 0.0
    %910 = vmatpush1.msra.mxu0 0.0
    %911 = vmatprep.subr.mxu0 0.0
    %912 = vmatpush1.msra.mxu0 0.0
    %913 = vmatprep.subr.mxu0 0.0
    %914 = vmatpush1.msra.mxu0 0.0
    %915 = vmatprep.subr.mxu0 0.0
    %916 = vmatpush1.msra.mxu0 0.0
    %917 = vmatprep.subr.mxu0 0.0
    %918 = vmatpush1.msra.mxu0 0.0
    %919 = vmatprep.subr.mxu0 0.0
    %920 = vmatpush1.msra.mxu0 0.0
    %921 = vmatprep.subr.mxu0 0.0
    %922 = vmatpush1.msra.mxu0 0.0
    %923 = vmatprep.subr.mxu0 0.0
    %924 = vmatpush1.msra.mxu0 0.0
    %925 = vmatprep.subr.mxu0 0.0
    %926 = vmatpush1.msra.mxu0 0.0
    %927 = vmatprep.subr.mxu0 0.0
    %928 = vmatpush1.msra.mxu0 0.0
    %929 = vmatprep.subr.mxu0 0.0
    %930 = vmatpush1.msra.mxu0 0.0
    %931 = vmatprep.subr.mxu0 0.0
    %932 = vmatpush1.msra.mxu0 0.0
    %933 = vmatprep.subr.mxu0 0.0
    %934 = vmatpush1.msra.mxu0 0.0
    %935 = vmatprep.subr.mxu0 0.0
    %936 = vmatpush1.msra.mxu0 0.0
    %937 = vmatprep.subr.mxu0 0.0
    %938 = vmatpush1.msra.mxu0 0.0
    %939 = vmatprep.subr.mxu0 0.0
    %940 = vmatpush1.msra.mxu0 0.0
    %941 = vmatprep.subr.mxu0 0.0
    %942 = vmatpush1.msra.mxu0 0.0
    %943 = vmatprep.subr.mxu0 0.0
    %944 = vmatpush1.msra.mxu0 0.0
    %945 = vmatprep.subr.mxu0 0.0
    %946 = vmatpush1.msra.mxu0 0.0
    %947 = vmatprep.subr.mxu0 0.0
    %948 = vmatpush1.msra.mxu0 0.0
    %949 = vmatprep.mubr.f32.mxu0 0.0
    %950 = vmatmul.mubr.f32.gmra.mrb[0].mxu0 %v883
    %v951 = vpop.f32.mrb[0].mxu0
    %v952 = vadd.f32 0.0, %v951
    %v953 = vpop.f32.mrb[0].mxu0
    %954 = vdwg.mxu0
    %s955 = scalar_lea.vmem %s0, 8
    %v956 = vld [vmem:[%s955] sm:$0x3]
    %v957 = vadd.f32 %v956, %v952
    %v958 = vtanh.pop %v957
    %v959 = vld [vmem:[%s4] sm:$0xff]
    %v960 = vld [vmem:[%s4 + $0x8] sm:$0xff]
    %v961 = vld [vmem:[%s4 + $0x10] sm:$0xff]
    %v962 = vld [vmem:[%s4 + $0x18] sm:$0xff]
    %v963 = vld [vmem:[#allocation8] sm:$0x1]
    %v965 = vlaneseq
    %v966 = vshrl.u32 %v965, 7
    %v967 = vsub.s32 0, %v966
    %v968 = vrot.slane %v963, %v967
    %v971 = vsel %vm104, %v958, 0
    %973 = vmatprep.subr.mxu0 0.0
    %974 = vmatpush1.msra.mxu0 %v959
    %975 = vmatprep.subr.mxu0 0.0
    %976 = vmatpush1.msra.mxu0 %v960
    %977 = vmatprep.subr.mxu0 0.0
    %978 = vmatpush1.msra.mxu0 %v961
    %979 = vmatprep.subr.mxu0 0.0
    %980 = vmatpush1.msra.mxu0 %v962
    %981 = vmatprep.subr.mxu0 0.0
    %982 = vmatpush1.msra.mxu0 0.0
    %983 = vmatprep.subr.mxu0 0.0
    %984 = vmatpush1.msra.mxu0 0.0
    %985 = vmatprep.subr.mxu0 0.0
    %986 = vmatpush1.msra.mxu0 0.0
    %987 = vmatprep.subr.mxu0 0.0
    %988 = vmatpush1.msra.mxu0 0.0
    %989 = vmatprep.subr.mxu0 0.0
    %990 = vmatpush1.msra.mxu0 0.0
    %991 = vmatprep.subr.mxu0 0.0
    %992 = vmatpush1.msra.mxu0 0.0
    %993 = vmatprep.subr.mxu0 0.0
    %994 = vmatpush1.msra.mxu0 0.0
    %995 = vmatprep.subr.mxu0 0.0
    %996 = vmatpush1.msra.mxu0 0.0
    %997 = vmatprep.subr.mxu0 0.0
    %998 = vmatpush1.msra.mxu0 0.0
    %999 = vmatprep.subr.mxu0 0.0
    %1000 = vmatpush1.msra.mxu0 0.0
    %1001 = vmatprep.subr.mxu0 0.0
    %1002 = vmatpush1.msra.mxu0 0.0
    %1003 = vmatprep.subr.mxu0 0.0
    %1004 = vmatpush1.msra.mxu0 0.0
    %1005 = vmatprep.subr.mxu0 0.0
    %1006 = vmatpush1.msra.mxu0 0.0
    %1007 = vmatprep.subr.mxu0 0.0
    %1008 = vmatpush1.msra.mxu0 0.0
    %1009 = vmatprep.subr.mxu0 0.0
    %1010 = vmatpush1.msra.mxu0 0.0
    %1011 = vmatprep.subr.mxu0 0.0
    %1012 = vmatpush1.msra.mxu0 0.0
    %1013 = vmatprep.subr.mxu0 0.0
    %1014 = vmatpush1.msra.mxu0 0.0
    %1015 = vmatprep.subr.mxu0 0.0
    %1016 = vmatpush1.msra.mxu0 0.0
    %1017 = vmatprep.subr.mxu0 0.0
    %1018 = vmatpush1.msra.mxu0 0.0
    %1019 = vmatprep.subr.mxu0 0.0
    %1020 = vmatpush1.msra.mxu0 0.0
    %1021 = vmatprep.subr.mxu0 0.0
    %1022 = vmatpush1.msra.mxu0 0.0
    %1023 = vmatprep.subr.mxu0 0.0
    %1024 = vmatpush1.msra.mxu0 0.0
    %1025 = vmatprep.subr.mxu0 0.0
    %1026 = vmatpush1.msra.mxu0 0.0
    %1027 = vmatprep.subr.mxu0 0.0
    %1028 = vmatpush1.msra.mxu0 0.0
    %1029 = vmatprep.subr.mxu0 0.0
    %1030 = vmatpush1.msra.mxu0 0.0
    %1031 = vmatprep.subr.mxu0 0.0
    %1032 = vmatpush1.msra.mxu0 0.0
    %1033 = vmatprep.subr.mxu0 0.0
    %1034 = vmatpush1.msra.mxu0 0.0
    %1035 = vmatprep.subr.mxu0 0.0
    %1036 = vmatpush1.msra.mxu0 0.0
    %1037 = vmatprep.mubr.f32.mxu0 0.0
    %1038 = vmatmul.mubr.f32.gmra.mrb[0].mxu0 %v971
    %v1039 = vpop.f32.mrb[0].mxu0
    %v1040 = vadd.f32 %v968, %v1039
    %v1041 = vpop.f32.mrb[0].mxu0
    %1042 = vdwg.mxu0
    %1044 = vrot.lane.b32.xlu0 %v952, 96
    %v1045 = vpop.permute.xlu0 %1044
    %v1047 = vadd.f32 %v1040, %v1045
    %v1048 = vtanh.pop %v1047
    %s1049 = scalar_lea.vmem %s1, 8
    %v1050 = vld [vmem:[%s1049] sm:$0x3]
    %1052 = vrot.lane.b32.xlu0 %v1048, 32
    %v1053 = vpop.permute.xlu0 %1052
    %v1055 = vsel %vm104, %v958, %v1053
    %v1056 = vsub.f32 %v1055, %v871
    %1058 = vset.pattern.permute.xlu0 0
    %1059 = vperm.xlu0 %1058, %v1050
    %v1060 = vpop.permute.xlu0 %1059
    %v1062 = vmul.f32 %v1060, %v1056
    %v1063 = vadd.f32 %v871, %v1062
    %v1064 = vmul.f32 %v1048, %v1060
    %1065 = vst.msk [vmem:[#allocation2 + $0x8] sm:$0x3] %vm296, %v1064
    %v1066 = vld [vmem:[#allocation6] sm:$0xff]
    %v1067 = vld [vmem:[#allocation6 + $0x8] sm:$0xff]
    %v1068 = vld [vmem:[#allocation6 + $0x10] sm:$0xff]
    %v1069 = vld [vmem:[#allocation6 + $0x18] sm:$0xff]
    %v1070 = vld [vmem:[#allocation6 + $0x20] sm:$0xff]
    %v1071 = vld [vmem:[#allocation6 + $0x28] sm:$0xff]
    %v1072 = vld [vmem:[#allocation6 + $0x30] sm:$0xff]
    %v1073 = vld [vmem:[#allocation6 + $0x38] sm:$0xff]
    %v1075 = vsel %vm114, %v1063, 0
    %1077 = vmatprep.subr.mxu0 0.0
    %1078 = vmatpush1.msra.mxu0 %v1066
    %1079 = vmatprep.subr.mxu0 0.0
    %1080 = vmatpush1.msra.mxu0 %v1067
    %1081 = vmatprep.subr.mxu0 0.0
    %1082 = vmatpush1.msra.mxu0 %v1068
    %1083 = vmatprep.subr.mxu0 0.0
    %1084 = vmatpush1.msra.mxu0 %v1069
    %1085 = vmatprep.subr.mxu0 0.0
    %1086 = vmatpush1.msra.mxu0 %v1070
    %1087 = vmatprep.subr.mxu0 0.0
    %1088 = vmatpush1.msra.mxu0 %v1071
    %1089 = vmatprep.subr.mxu0 0.0
    %1090 = vmatpush1.msra.mxu0 %v1072
    %1091 = vmatprep.subr.mxu0 0.0
    %1092 = vmatpush1.msra.mxu0 %v1073
    %1093 = vmatprep.subr.mxu0 0.0
    %1094 = vmatpush1.msra.mxu0 0.0
    %1095 = vmatprep.subr.mxu0 0.0
    %1096 = vmatpush1.msra.mxu0 0.0
    %1097 = vmatprep.subr.mxu0 0.0
    %1098 = vmatpush1.msra.mxu0 0.0
    %1099 = vmatprep.subr.mxu0 0.0
    %1100 = vmatpush1.msra.mxu0 0.0
    %1101 = vmatprep.subr.mxu0 0.0
    %1102 = vmatpush1.msra.mxu0 0.0
    %1103 = vmatprep.subr.mxu0 0.0
    %1104 = vmatpush1.msra.mxu0 0.0
    %1105 = vmatprep.subr.mxu0 0.0
    %1106 = vmatpush1.msra.mxu0 0.0
    %1107 = vmatprep.subr.mxu0 0.0
    %1108 = vmatpush1.msra.mxu0 0.0
    %1109 = vmatprep.subr.mxu0 0.0
    %1110 = vmatpush1.msra.mxu0 0.0
    %1111 = vmatprep.subr.mxu0 0.0
    %1112 = vmatpush1.msra.mxu0 0.0
    %1113 = vmatprep.subr.mxu0 0.0
    %1114 = vmatpush1.msra.mxu0 0.0
    %1115 = vmatprep.subr.mxu0 0.0
    %1116 = vmatpush1.msra.mxu0 0.0
    %1117 = vmatprep.subr.mxu0 0.0
    %1118 = vmatpush1.msra.mxu0 0.0
    %1119 = vmatprep.subr.mxu0 0.0
    %1120 = vmatpush1.msra.mxu0 0.0
    %1121 = vmatprep.subr.mxu0 0.0
    %1122 = vmatpush1.msra.mxu0 0.0
    %1123 = vmatprep.subr.mxu0 0.0
    %1124 = vmatpush1.msra.mxu0 0.0
    %1125 = vmatprep.subr.mxu0 0.0
    %1126 = vmatpush1.msra.mxu0 0.0
    %1127 = vmatprep.subr.mxu0 0.0
    %1128 = vmatpush1.msra.mxu0 0.0
    %1129 = vmatprep.subr.mxu0 0.0
    %1130 = vmatpush1.msra.mxu0 0.0
    %1131 = vmatprep.subr.mxu0 0.0
    %1132 = vmatpush1.msra.mxu0 0.0
    %1133 = vmatprep.subr.mxu0 0.0
    %1134 = vmatpush1.msra.mxu0 0.0
    %1135 = vmatprep.subr.mxu0 0.0
    %1136 = vmatpush1.msra.mxu0 0.0
    %1137 = vmatprep.subr.mxu0 0.0
    %1138 = vmatpush1.msra.mxu0 0.0
    %1139 = vmatprep.subr.mxu0 0.0
    %1140 = vmatpush1.msra.mxu0 0.0
    %1141 = vmatprep.mubr.f32.mxu0 0.0
    %1142 = vmatmul.mubr.f32.gmra.mrb[0].mxu0 %v1075
    %v1143 = vpop.f32.mrb[0].mxu0
    %v1144 = vadd.f32 0.0, %v1143
    %v1145 = vpop.f32.mrb[0].mxu0
    %1146 = vdwg.mxu0
    %s1147 = scalar_lea.vmem %s0, 10
    %v1148 = vld [vmem:[%s1147] sm:$0x3]
    %v1149 = vadd.f32 %v1148, %v1144
    %v1150 = vtanh.pop %v1149
    %v1151 = vld [vmem:[%s4] sm:$0xff]
    %v1152 = vld [vmem:[%s4 + $0x8] sm:$0xff]
    %v1153 = vld [vmem:[%s4 + $0x10] sm:$0xff]
    %v1154 = vld [vmem:[%s4 + $0x18] sm:$0xff]
    %v1155 = vld [vmem:[#allocation8] sm:$0x1]
    %v1157 = vlaneseq
    %v1158 = vshrl.u32 %v1157, 7
    %v1159 = vsub.s32 0, %v1158
    %v1160 = vrot.slane %v1155, %v1159
    %v1163 = vsel %vm104, %v1150, 0
    %1165 = vmatprep.subr.mxu0 0.0
    %1166 = vmatpush1.msra.mxu0 %v1151
    %1167 = vmatprep.subr.mxu0 0.0
    %1168 = vmatpush1.msra.mxu0 %v1152
    %1169 = vmatprep.subr.mxu0 0.0
    %1170 = vmatpush1.msra.mxu0 %v1153
    %1171 = vmatprep.subr.mxu0 0.0
    %1172 = vmatpush1.msra.mxu0 %v1154
    %1173 = vmatprep.subr.mxu0 0.0
    %1174 = vmatpush1.msra.mxu0 0.0
    %1175 = vmatprep.subr.mxu0 0.0
    %1176 = vmatpush1.msra.mxu0 0.0
    %1177 = vmatprep.subr.mxu0 0.0
    %1178 = vmatpush1.msra.mxu0 0.0
    %1179 = vmatprep.subr.mxu0 0.0
    %1180 = vmatpush1.msra.mxu0 0.0
    %1181 = vmatprep.subr.mxu0 0.0
    %1182 = vmatpush1.msra.mxu0 0.0
    %1183 = vmatprep.subr.mxu0 0.0
    %1184 = vmatpush1.msra.mxu0 0.0
    %1185 = vmatprep.subr.mxu0 0.0
    %1186 = vmatpush1.msra.mxu0 0.0
    %1187 = vmatprep.subr.mxu0 0.0
    %1188 = vmatpush1.msra.mxu0 0.0
    %1189 = vmatprep.subr.mxu0 0.0
    %1190 = vmatpush1.msra.mxu0 0.0
    %1191 = vmatprep.subr.mxu0 0.0
    %1192 = vmatpush1.msra.mxu0 0.0
    %1193 = vmatprep.subr.mxu0 0.0
    %1194 = vmatpush1.msra.mxu0 0.0
    %1195 = vmatprep.subr.mxu0 0.0
    %1196 = vmatpush1.msra.mxu0 0.0
    %1197 = vmatprep.subr.mxu0 0.0
    %1198 = vmatpush1.msra.mxu0 0.0
    %1199 = vmatprep.subr.mxu0 0.0
    %1200 = vmatpush1.msra.mxu0 0.0
    %1201 = vmatprep.subr.mxu0 0.0
    %1202 = vmatpush1.msra.mxu0 0.0
    %1203 = vmatprep.subr.mxu0 0.0
    %1204 = vmatpush1.msra.mxu0 0.0
    %1205 = vmatprep.subr.mxu0 0.0
    %1206 = vmatpush1.msra.mxu0 0.0
    %1207 = vmatprep.subr.mxu0 0.0
    %1208 = vmatpush1.msra.mxu0 0.0
    %1209 = vmatprep.subr.mxu0 0.0
    %1210 = vmatpush1.msra.mxu0 0.0
    %1211 = vmatprep.subr.mxu0 0.0
    %1212 = vmatpush1.msra.mxu0 0.0
    %1213 = vmatprep.subr.mxu0 0.0
    %1214 = vmatpush1.msra.mxu0 0.0
    %1215 = vmatprep.subr.mxu0 0.0
    %1216 = vmatpush1.msra.mxu0 0.0
    %1217 = vmatprep.subr.mxu0 0.0
    %1218 = vmatpush1.msra.mxu0 0.0
    %1219 = vmatprep.subr.mxu0 0.0
    %1220 = vmatpush1.msra.mxu0 0.0
    %1221 = vmatprep.subr.mxu0 0.0
    %1222 = vmatpush1.msra.mxu0 0.0
    %1223 = vmatprep.subr.mxu0 0.0
    %1224 = vmatpush1.msra.mxu0 0.0
    %1225 = vmatprep.subr.mxu0 0.0
    %1226 = vmatpush1.msra.mxu0 0.0
    %1227 = vmatprep.subr.mxu0 0.0
    %1228 = vmatpush1.msra.mxu0 0.0
    %1229 = vmatprep.mubr.f32.mxu0 0.0
    %1230 = vmatmul.mubr.f32.gmra.mrb[0].mxu0 %v1163
    %v1231 = vpop.f32.mrb[0].mxu0
    %v1232 = vadd.f32 %v1160, %v1231
    %v1233 = vpop.f32.mrb[0].mxu0
    %1234 = vdwg.mxu0
    %1236 = vrot.lane.b32.xlu0 %v1144, 96
    %v1237 = vpop.permute.xlu0 %1236
    %v1239 = vadd.f32 %v1232, %v1237
    %v1240 = vtanh.pop %v1239
    %s1241 = scalar_lea.vmem %s1, 10
    %v1242 = vld [vmem:[%s1241] sm:$0x3]
    %1244 = vrot.lane.b32.xlu0 %v1240, 32
    %v1245 = vpop.permute.xlu0 %1244
    %v1247 = vsel %vm104, %v1150, %v1245
    %v1248 = vsub.f32 %v1247, %v1063
    %1250 = vset.pattern.permute.xlu0 0
    %1251 = vperm.xlu0 %1250, %v1242
    %v1252 = vpop.permute.xlu0 %1251
    %v1254 = vmul.f32 %v1252, %v1248
    %v1255 = vadd.f32 %v1063, %v1254
    %v1256 = vmul.f32 %v1240, %v1252
    %1257 = vst.msk [vmem:[#allocation2 + $0xa] sm:$0x3] %vm296, %v1256
    %v1258 = vld [vmem:[#allocation6] sm:$0xff]
    %v1259 = vld [vmem:[#allocation6 + $0x8] sm:$0xff]
    %v1260 = vld [vmem:[#allocation6 + $0x10] sm:$0xff]
    %v1261 = vld [vmem:[#allocation6 + $0x18] sm:$0xff]
    %v1262 = vld [vmem:[#allocation6 + $0x20] sm:$0xff]
    %v1263 = vld [vmem:[#allocation6 + $0x28] sm:$0xff]
    %v1264 = vld [vmem:[#allocation6 + $0x30] sm:$0xff]
    %v1265 = vld [vmem:[#allocation6 + $0x38] sm:$0xff]
    %v1267 = vsel %vm114, %v1255, 0
    %1269 = vmatprep.subr.mxu0 0.0
    %1270 = vmatpush1.msra.mxu0 %v1258
    %1271 = vmatprep.subr.mxu0 0.0
    %1272 = vmatpush1.msra.mxu0 %v1259
    %1273 = vmatprep.subr.mxu0 0.0
    %1274 = vmatpush1.msra.mxu0 %v1260
    %1275 = vmatprep.subr.mxu0 0.0
    %1276 = vmatpush1.msra.mxu0 %v1261
    %1277 = vmatprep.subr.mxu0 0.0
    %1278 = vmatpush1.msra.mxu0 %v1262
    %1279 = vmatprep.subr.mxu0 0.0
    %1280 = vmatpush1.msra.mxu0 %v1263
    %1281 = vmatprep.subr.mxu0 0.0
    %1282 = vmatpush1.msra.mxu0 %v1264
    %1283 = vmatprep.subr.mxu0 0.0
    %1284 = vmatpush1.msra.mxu0 %v1265
    %1285 = vmatprep.subr.mxu0 0.0
    %1286 = vmatpush1.msra.mxu0 0.0
    %1287 = vmatprep.subr.mxu0 0.0
    %1288 = vmatpush1.msra.mxu0 0.0
    %1289 = vmatprep.subr.mxu0 0.0
    %1290 = vmatpush1.msra.mxu0 0.0
    %1291 = vmatprep.subr.mxu0 0.0
    %1292 = vmatpush1.msra.mxu0 0.0
    %1293 = vmatprep.subr.mxu0 0.0
    %1294 = vmatpush1.msra.mxu0 0.0
    %1295 = vmatprep.subr.mxu0 0.0
    %1296 = vmatpush1.msra.mxu0 0.0
    %1297 = vmatprep.subr.mxu0 0.0
    %1298 = vmatpush1.msra.mxu0 0.0
    %1299 = vmatprep.subr.mxu0 0.0
    %1300 = vmatpush1.msra.mxu0 0.0
    %1301 = vmatprep.subr.mxu0 0.0
    %1302 = vmatpush1.msra.mxu0 0.0
    %1303 = vmatprep.subr.mxu0 0.0
    %1304 = vmatpush1.msra.mxu0 0.0
    %1305 = vmatprep.subr.mxu0 0.0
    %1306 = vmatpush1.msra.mxu0 0.0
    %1307 = vmatprep.subr.mxu0 0.0
    %1308 = vmatpush1.msra.mxu0 0.0
    %1309 = vmatprep.subr.mxu0 0.0
    %1310 = vmatpush1.msra.mxu0 0.0
    %1311 = vmatprep.subr.mxu0 0.0
    %1312 = vmatpush1.msra.mxu0 0.0
    %1313 = vmatprep.subr.mxu0 0.0
    %1314 = vmatpush1.msra.mxu0 0.0
    %1315 = vmatprep.subr.mxu0 0.0
    %1316 = vmatpush1.msra.mxu0 0.0
    %1317 = vmatprep.subr.mxu0 0.0
    %1318 = vmatpush1.msra.mxu0 0.0
    %1319 = vmatprep.subr.mxu0 0.0
    %1320 = vmatpush1.msra.mxu0 0.0
    %1321 = vmatprep.subr.mxu0 0.0
    %1322 = vmatpush1.msra.mxu0 0.0
    %1323 = vmatprep.subr.mxu0 0.0
    %1324 = vmatpush1.msra.mxu0 0.0
    %1325 = vmatprep.subr.mxu0 0.0
    %1326 = vmatpush1.msra.mxu0 0.0
    %1327 = vmatprep.subr.mxu0 0.0
    %1328 = vmatpush1.msra.mxu0 0.0
    %1329 = vmatprep.subr.mxu0 0.0
    %1330 = vmatpush1.msra.mxu0 0.0
    %1331 = vmatprep.subr.mxu0 0.0
    %1332 = vmatpush1.msra.mxu0 0.0
    %1333 = vmatprep.mubr.f32.mxu0 0.0
    %1334 = vmatmul.mubr.f32.gmra.mrb[0].mxu0 %v1267
    %v1335 = vpop.f32.mrb[0].mxu0
    %v1336 = vadd.f32 0.0, %v1335
    %v1337 = vpop.f32.mrb[0].mxu0
    %1338 = vdwg.mxu0
    %s1339 = scalar_lea.vmem %s0, 12
    %v1340 = vld [vmem:[%s1339] sm:$0x3]
    %v1341 = vadd.f32 %v1340, %v1336
    %v1342 = vtanh.pop %v1341
    %v1343 = vld [vmem:[%s4] sm:$0xff]
    %v1344 = vld [vmem:[%s4 + $0x8] sm:$0xff]
    %v1345 = vld [vmem:[%s4 + $0x10] sm:$0xff]
    %v1346 = vld [vmem:[%s4 + $0x18] sm:$0xff]
    %v1347 = vld [vmem:[#allocation8] sm:$0x1]
    %v1349 = vlaneseq
    %v1350 = vshrl.u32 %v1349, 7
    %v1351 = vsub.s32 0, %v1350
    %v1352 = vrot.slane %v1347, %v1351
    %v1355 = vsel %vm104, %v1342, 0
    %1357 = vmatprep.subr.mxu0 0.0
    %1358 = vmatpush1.msra.mxu0 %v1343
    %1359 = vmatprep.subr.mxu0 0.0
    %1360 = vmatpush1.msra.mxu0 %v1344
    %1361 = vmatprep.subr.mxu0 0.0
    %1362 = vmatpush1.msra.mxu0 %v1345
    %1363 = vmatprep.subr.mxu0 0.0
    %1364 = vmatpush1.msra.mxu0 %v1346
    %1365 = vmatprep.subr.mxu0 0.0
    %1366 = vmatpush1.msra.mxu0 0.0
    %1367 = vmatprep.subr.mxu0 0.0
    %1368 = vmatpush1.msra.mxu0 0.0
    %1369 = vmatprep.subr.mxu0 0.0
    %1370 = vmatpush1.msra.mxu0 0.0
    %1371 = vmatprep.subr.mxu0 0.0
    %1372 = vmatpush1.msra.mxu0 0.0
    %1373 = vmatprep.subr.mxu0 0.0
    %1374 = vmatpush1.msra.mxu0 0.0
    %1375 = vmatprep.subr.mxu0 0.0
    %1376 = vmatpush1.msra.mxu0 0.0
    %1377 = vmatprep.subr.mxu0 0.0
    %1378 = vmatpush1.msra.mxu0 0.0
    %1379 = vmatprep.subr.mxu0 0.0
    %1380 = vmatpush1.msra.mxu0 0.0
    %1381 = vmatprep.subr.mxu0 0.0
    %1382 = vmatpush1.msra.mxu0 0.0
    %1383 = vmatprep.subr.mxu0 0.0
    %1384 = vmatpush1.msra.mxu0 0.0
    %1385 = vmatprep.subr.mxu0 0.0
    %1386 = vmatpush1.msra.mxu0 0.0
    %1387 = vmatprep.subr.mxu0 0.0
    %1388 = vmatpush1.msra.mxu0 0.0
    %1389 = vmatprep.subr.mxu0 0.0
    %1390 = vmatpush1.msra.mxu0 0.0
    %1391 = vmatprep.subr.mxu0 0.0
    %1392 = vmatpush1.msra.mxu0 0.0
    %1393 = vmatprep.subr.mxu0 0.0
    %1394 = vmatpush1.msra.mxu0 0.0
    %1395 = vmatprep.subr.mxu0 0.0
    %1396 = vmatpush1.msra.mxu0 0.0
    %1397 = vmatprep.subr.mxu0 0.0
    %1398 = vmatpush1.msra.mxu0 0.0
    %1399 = vmatprep.subr.mxu0 0.0
    %1400 = vmatpush1.msra.mxu0 0.0
    %1401 = vmatprep.subr.mxu0 0.0
    %1402 = vmatpush1.msra.mxu0 0.0
    %1403 = vmatprep.subr.mxu0 0.0
    %1404 = vmatpush1.msra.mxu0 0.0
    %1405 = vmatprep.subr.mxu0 0.0
    %1406 = vmatpush1.msra.mxu0 0.0
    %1407 = vmatprep.subr.mxu0 0.0
    %1408 = vmatpush1.msra.mxu0 0.0
    %1409 = vmatprep.subr.mxu0 0.0
    %1410 = vmatpush1.msra.mxu0 0.0
    %1411 = vmatprep.subr.mxu0 0.0
    %1412 = vmatpush1.msra.mxu0 0.0
    %1413 = vmatprep.subr.mxu0 0.0
    %1414 = vmatpush1.msra.mxu0 0.0
    %1415 = vmatprep.subr.mxu0 0.0
    %1416 = vmatpush1.msra.mxu0 0.0
    %1417 = vmatprep.subr.mxu0 0.0
    %1418 = vmatpush1.msra.mxu0 0.0
    %1419 = vmatprep.subr.mxu0 0.0
    %1420 = vmatpush1.msra.mxu0 0.0
    %1421 = vmatprep.mubr.f32.mxu0 0.0
    %1422 = vmatmul.mubr.f32.gmra.mrb[0].mxu0 %v1355
    %v1423 = vpop.f32.mrb[0].mxu0
    %v1424 = vadd.f32 %v1352, %v1423
    %v1425 = vpop.f32.mrb[0].mxu0
    %1426 = vdwg.mxu0
    %1428 = vrot.lane.b32.xlu0 %v1336, 96
    %v1429 = vpop.permute.xlu0 %1428
    %v1431 = vadd.f32 %v1424, %v1429
    %v1432 = vtanh.pop %v1431
    %s1433 = scalar_lea.vmem %s1, 12
    %v1434 = vld [vmem:[%s1433] sm:$0x3]
    %1436 = vrot.lane.b32.xlu0 %v1432, 32
    %v1437 = vpop.permute.xlu0 %1436
    %v1439 = vsel %vm104, %v1342, %v1437
    %v1440 = vsub.f32 %v1439, %v1255
    %1442 = vset.pattern.permute.xlu0 0
    %1443 = vperm.xlu0 %1442, %v1434
    %v1444 = vpop.permute.xlu0 %1443
    %v1446 = vmul.f32 %v1444, %v1440
    %v1447 = vadd.f32 %v1255, %v1446
    %v1448 = vmul.f32 %v1432, %v1444
    %1449 = vst.msk [vmem:[#allocation2 + $0xc] sm:$0x3] %vm296, %v1448
    %v1450 = vld [vmem:[#allocation6] sm:$0xff]
    %v1451 = vld [vmem:[#allocation6 + $0x8] sm:$0xff]
    %v1452 = vld [vmem:[#allocation6 + $0x10] sm:$0xff]
    %v1453 = vld [vmem:[#allocation6 + $0x18] sm:$0xff]
    %v1454 = vld [vmem:[#allocation6 + $0x20] sm:$0xff]
    %v1455 = vld [vmem:[#allocation6 + $0x28] sm:$0xff]
    %v1456 = vld [vmem:[#allocation6 + $0x30] sm:$0xff]
    %v1457 = vld [vmem:[#allocation6 + $0x38] sm:$0xff]
    %v1459 = vsel %vm114, %v1447, 0
    %1461 = vmatprep.subr.mxu0 0.0
    %1462 = vmatpush1.msra.mxu0 %v1450
    %1463 = vmatprep.subr.mxu0 0.0
    %1464 = vmatpush1.msra.mxu0 %v1451
    %1465 = vmatprep.subr.mxu0 0.0
    %1466 = vmatpush1.msra.mxu0 %v1452
    %1467 = vmatprep.subr.mxu0 0.0
    %1468 = vmatpush1.msra.mxu0 %v1453
    %1469 = vmatprep.subr.mxu0 0.0
    %1470 = vmatpush1.msra.mxu0 %v1454
    %1471 = vmatprep.subr.mxu0 0.0
    %1472 = vmatpush1.msra.mxu0 %v1455
    %1473 = vmatprep.subr.mxu0 0.0
    %1474 = vmatpush1.msra.mxu0 %v1456
    %1475 = vmatprep.subr.mxu0 0.0
    %1476 = vmatpush1.msra.mxu0 %v1457
    %1477 = vmatprep.subr.mxu0 0.0
    %1478 = vmatpush1.msra.mxu0 0.0
    %1479 = vmatprep.subr.mxu0 0.0
    %1480 = vmatpush1.msra.mxu0 0.0
    %1481 = vmatprep.subr.mxu0 0.0
    %1482 = vmatpush1.msra.mxu0 0.0
    %1483 = vmatprep.subr.mxu0 0.0
    %1484 = vmatpush1.msra.mxu0 0.0
    %1485 = vmatprep.subr.mxu0 0.0
    %1486 = vmatpush1.msra.mxu0 0.0
    %1487 = vmatprep.subr.mxu0 0.0
    %1488 = vmatpush1.msra.mxu0 0.0
    %1489 = vmatprep.subr.mxu0 0.0
    %1490 = vmatpush1.msra.mxu0 0.0
    %1491 = vmatprep.subr.mxu0 0.0
    %1492 = vmatpush1.msra.mxu0 0.0
    %1493 = vmatprep.subr.mxu0 0.0
    %1494 = vmatpush1.msra.mxu0 0.0
    %1495 = vmatprep.subr.mxu0 0.0
    %1496 = vmatpush1.msra.mxu0 0.0
    %1497 = vmatprep.subr.mxu0 0.0
    %1498 = vmatpush1.msra.mxu0 0.0
    %1499 = vmatprep.subr.mxu0 0.0
    %1500 = vmatpush1.msra.mxu0 0.0
    %1501 = vmatprep.subr.mxu0 0.0
    %1502 = vmatpush1.msra.mxu0 0.0
    %1503 = vmatprep.subr.mxu0 0.0
    %1504 = vmatpush1.msra.mxu0 0.0
    %1505 = vmatprep.subr.mxu0 0.0
    %1506 = vmatpush1.msra.mxu0 0.0
    %1507 = vmatprep.subr.mxu0 0.0
    %1508 = vmatpush1.msra.mxu0 0.0
    %1509 = vmatprep.subr.mxu0 0.0
    %1510 = vmatpush1.msra.mxu0 0.0
    %1511 = vmatprep.subr.mxu0 0.0
    %1512 = vmatpush1.msra.mxu0 0.0
    %1513 = vmatprep.subr.mxu0 0.0
    %1514 = vmatpush1.msra.mxu0 0.0
    %1515 = vmatprep.subr.mxu0 0.0
    %1516 = vmatpush1.msra.mxu0 0.0
    %1517 = vmatprep.subr.mxu0 0.0
    %1518 = vmatpush1.msra.mxu0 0.0
    %1519 = vmatprep.subr.mxu0 0.0
    %1520 = vmatpush1.msra.mxu0 0.0
    %1521 = vmatprep.subr.mxu0 0.0
    %1522 = vmatpush1.msra.mxu0 0.0
    %1523 = vmatprep.subr.mxu0 0.0
    %1524 = vmatpush1.msra.mxu0 0.0
    %1525 = vmatprep.mubr.f32.mxu0 0.0
    %1526 = vmatmul.mubr.f32.gmra.mrb[0].mxu0 %v1459
    %v1527 = vpop.f32.mrb[0].mxu0
    %v1528 = vadd.f32 0.0, %v1527
    %v1529 = vpop.f32.mrb[0].mxu0
    %1530 = vdwg.mxu0
    %s1531 = scalar_lea.vmem %s0, 14
    %v1532 = vld [vmem:[%s1531] sm:$0x3]
    %v1533 = vadd.f32 %v1532, %v1528
    %v1534 = vtanh.pop %v1533
    %v1535 = vld [vmem:[%s4] sm:$0xff]
    %v1536 = vld [vmem:[%s4 + $0x8] sm:$0xff]
    %v1537 = vld [vmem:[%s4 + $0x10] sm:$0xff]
    %v1538 = vld [vmem:[%s4 + $0x18] sm:$0xff]
    %v1539 = vld [vmem:[#allocation8] sm:$0x1]
    %v1541 = vlaneseq
    %v1542 = vshrl.u32 %v1541, 7
    %v1543 = vsub.s32 0, %v1542
    %v1544 = vrot.slane %v1539, %v1543
    %v1547 = vsel %vm104, %v1534, 0
    %1549 = vmatprep.subr.mxu0 0.0
    %1550 = vmatpush1.msra.mxu0 %v1535
    %1551 = vmatprep.subr.mxu0 0.0
    %1552 = vmatpush1.msra.mxu0 %v1536
    %1553 = vmatprep.subr.mxu0 0.0
    %1554 = vmatpush1.msra.mxu0 %v1537
    %1555 = vmatprep.subr.mxu0 0.0
    %1556 = vmatpush1.msra.mxu0 %v1538
    %1557 = vmatprep.subr.mxu0 0.0
    %1558 = vmatpush1.msra.mxu0 0.0
    %1559 = vmatprep.subr.mxu0 0.0
    %1560 = vmatpush1.msra.mxu0 0.0
    %1561 = vmatprep.subr.mxu0 0.0
    %1562 = vmatpush1.msra.mxu0 0.0
    %1563 = vmatprep.subr.mxu0 0.0
    %1564 = vmatpush1.msra.mxu0 0.0
    %1565 = vmatprep.subr.mxu0 0.0
    %1566 = vmatpush1.msra.mxu0 0.0
    %1567 = vmatprep.subr.mxu0 0.0
    %1568 = vmatpush1.msra.mxu0 0.0
    %1569 = vmatprep.subr.mxu0 0.0
    %1570 = vmatpush1.msra.mxu0 0.0
    %1571 = vmatprep.subr.mxu0 0.0
    %1572 = vmatpush1.msra.mxu0 0.0
    %1573 = vmatprep.subr.mxu0 0.0
    %1574 = vmatpush1.msra.mxu0 0.0
    %1575 = vmatprep.subr.mxu0 0.0
    %1576 = vmatpush1.msra.mxu0 0.0
    %1577 = vmatprep.subr.mxu0 0.0
    %1578 = vmatpush1.msra.mxu0 0.0
    %1579 = vmatprep.subr.mxu0 0.0
    %1580 = vmatpush1.msra.mxu0 0.0
    %1581 = vmatprep.subr.mxu0 0.0
    %1582 = vmatpush1.msra.mxu0 0.0
    %1583 = vmatprep.subr.mxu0 0.0
    %1584 = vmatpush1.msra.mxu0 0.0
    %1585 = vmatprep.subr.mxu0 0.0
    %1586 = vmatpush1.msra.mxu0 0.0
    %1587 = vmatprep.subr.mxu0 0.0
    %1588 = vmatpush1.msra.mxu0 0.0
    %1589 = vmatprep.subr.mxu0 0.0
    %1590 = vmatpush1.msra.mxu0 0.0
    %1591 = vmatprep.subr.mxu0 0.0
    %1592 = vmatpush1.msra.mxu0 0.0
    %1593 = vmatprep.subr.mxu0 0.0
    %1594 = vmatpush1.msra.mxu0 0.0
    %1595 = vmatprep.subr.mxu0 0.0
    %1596 = vmatpush1.msra.mxu0 0.0
    %1597 = vmatprep.subr.mxu0 0.0
    %1598 = vmatpush1.msra.mxu0 0.0
    %1599 = vmatprep.subr.mxu0 0.0
    %1600 = vmatpush1.msra.mxu0 0.0
    %1601 = vmatprep.subr.mxu0 0.0
    %1602 = vmatpush1.msra.mxu0 0.0
    %1603 = vmatprep.subr.mxu0 0.0
    %1604 = vmatpush1.msra.mxu0 0.0
    %1605 = vmatprep.subr.mxu0 0.0
    %1606 = vmatpush1.msra.mxu0 0.0
    %1607 = vmatprep.subr.mxu0 0.0
    %1608 = vmatpush1.msra.mxu0 0.0
    %1609 = vmatprep.subr.mxu0 0.0
    %1610 = vmatpush1.msra.mxu0 0.0
    %1611 = vmatprep.subr.mxu0 0.0
    %1612 = vmatpush1.msra.mxu0 0.0
    %1613 = vmatprep.mubr.f32.mxu0 0.0
    %1614 = vmatmul.mubr.f32.gmra.mrb[0].mxu0 %v1547
    %v1615 = vpop.f32.mrb[0].mxu0
    %v1616 = vadd.f32 %v1544, %v1615
    %v1617 = vpop.f32.mrb[0].mxu0
    %1618 = vdwg.mxu0
    %1620 = vrot.lane.b32.xlu0 %v1528, 96
    %v1621 = vpop.permute.xlu0 %1620
    %v1623 = vadd.f32 %v1616, %v1621
    %v1624 = vtanh.pop %v1623
    %s1625 = scalar_lea.vmem %s1, 14
    %v1626 = vld [vmem:[%s1625] sm:$0x3]
    %1628 = vrot.lane.b32.xlu0 %v1624, 32
    %v1629 = vpop.permute.xlu0 %1628
    %v1631 = vsel %vm104, %v1534, %v1629
    %v1632 = vsub.f32 %v1631, %v1447
    %1634 = vset.pattern.permute.xlu0 0
    %1635 = vperm.xlu0 %1634, %v1626
    %v1636 = vpop.permute.xlu0 %1635
    %v1638 = vmul.f32 %v1636, %v1632
    %v1639 = vadd.f32 %v1447, %v1638
    %v1640 = vmul.f32 %v1624, %v1636
    %1641 = vst.msk [vmem:[#allocation2 + $0xe] sm:$0x3] %vm296, %v1640
    %1642 = vst.msk [vmem:[#allocation13] sm:$0x3] %vm296, %v1639
    %1644 = vrot.lane.b32.xlu0 %v1639, 96
    %v1645 = vpop.permute.xlu0 %1644
    %s1647 = scalar_lea.vmem [#allocation13], 2
    %1648 = vst.msk [vmem:[%s1647] sm:$0x3] %vm296, %v1645
    %v1649 = vld [vmem:[#allocation2] sm:$0xff]
    %v1650 = vld [vmem:[#allocation2 + $0x8] sm:$0xff]
    %v1651 = vld [vmem:[#allocation9] sm:$0xff]
    %v1652 = vld [vmem:[#allocation9 + $0x8] sm:$0xff]
    %v1653 = vld [vmem:[#allocation9 + $0x10] sm:$0xff]
    %v1654 = vld [vmem:[#allocation9 + $0x18] sm:$0xff]
    %v1655 = vld [vmem:[#allocation11] sm:$0x1]
    %v1657 = vlaneseq
    %v1658 = vshrl.u32 %v1657, 7
    %v1659 = vsub.s32 0, %v1658
    %v1660 = vrot.slane %v1655, %v1659
    %v1663 = vsel %vm104, %v1649, 0
    %v1666 = vsel %vm104, %v1650, 0
    %1668 = vmatprep.subr.mxu0 0.0
    %1669 = vmatpush1.msra.mxu0 %v1651
    %1670 = vmatprep.subr.mxu0 0.0
    %1671 = vmatpush1.msra.mxu0 %v1652
    %1672 = vmatprep.subr.mxu0 0.0
    %1673 = vmatpush1.msra.mxu0 %v1653
    %1674 = vmatprep.subr.mxu0 0.0
    %1675 = vmatpush1.msra.mxu0 %v1654
    %1676 = vmatprep.subr.mxu0 0.0
    %1677 = vmatpush1.msra.mxu0 0.0
    %1678 = vmatprep.subr.mxu0 0.0
    %1679 = vmatpush1.msra.mxu0 0.0
    %1680 = vmatprep.subr.mxu0 0.0
    %1681 = vmatpush1.msra.mxu0 0.0
    %1682 = vmatprep.subr.mxu0 0.0
    %1683 = vmatpush1.msra.mxu0 0.0
    %1684 = vmatprep.subr.mxu0 0.0
    %1685 = vmatpush1.msra.mxu0 0.0
    %1686 = vmatprep.subr.mxu0 0.0
    %1687 = vmatpush1.msra.mxu0 0.0
    %1688 = vmatprep.subr.mxu0 0.0
    %1689 = vmatpush1.msra.mxu0 0.0
    %1690 = vmatprep.subr.mxu0 0.0
    %1691 = vmatpush1.msra.mxu0 0.0
    %1692 = vmatprep.subr.mxu0 0.0
    %1693 = vmatpush1.msra.mxu0 0.0
    %1694 = vmatprep.subr.mxu0 0.0
    %1695 = vmatpush1.msra.mxu0 0.0
    %1696 = vmatprep.subr.mxu0 0.0
    %1697 = vmatpush1.msra.mxu0 0.0
    %1698 = vmatprep.subr.mxu0 0.0
    %1699 = vmatpush1.msra.mxu0 0.0
    %1700 = vmatprep.subr.mxu0 0.0
    %1701 = vmatpush1.msra.mxu0 0.0
    %1702 = vmatprep.subr.mxu0 0.0
    %1703 = vmatpush1.msra.mxu0 0.0
    %1704 = vmatprep.subr.mxu0 0.0
    %1705 = vmatpush1.msra.mxu0 0.0
    %1706 = vmatprep.subr.mxu0 0.0
    %1707 = vmatpush1.msra.mxu0 0.0
    %1708 = vmatprep.subr.mxu0 0.0
    %1709 = vmatpush1.msra.mxu0 0.0
    %1710 = vmatprep.subr.mxu0 0.0
    %1711 = vmatpush1.msra.mxu0 0.0
    %1712 = vmatprep.subr.mxu0 0.0
    %1713 = vmatpush1.msra.mxu0 0.0
    %1714 = vmatprep.subr.mxu0 0.0
    %1715 = vmatpush1.msra.mxu0 0.0
    %1716 = vmatprep.subr.mxu0 0.0
    %1717 = vmatpush1.msra.mxu0 0.0
    %1718 = vmatprep.subr.mxu0 0.0
    %1719 = vmatpush1.msra.mxu0 0.0
    %1720 = vmatprep.subr.mxu0 0.0
    %1721 = vmatpush1.msra.mxu0 0.0
    %1722 = vmatprep.subr.mxu0 0.0
    %1723 = vmatpush1.msra.mxu0 0.0
    %1724 = vmatprep.subr.mxu0 0.0
    %1725 = vmatpush1.msra.mxu0 0.0
    %1726 = vmatprep.subr.mxu0 0.0
    %1727 = vmatpush1.msra.mxu0 0.0
    %1728 = vmatprep.subr.mxu0 0.0
    %1729 = vmatpush1.msra.mxu0 0.0
    %1730 = vmatprep.subr.mxu0 0.0
    %1731 = vmatpush1.msra.mxu0 0.0
    %1732 = vmatprep.mubr.f32.mxu0 0.0
    %1733 = vmatmul.mubr.f32.gmra.mrb[0].mxu0 %v1663
    %v1734 = vpop.f32.mrb[0].mxu0
    %v1735 = vadd.f32 %v1660, %v1734
    %v1736 = vpop.f32.mrb[0].mxu0
    %1737 = vmatprep.mubr.f32.mxu0 0.0
    %1738 = vmatmul.mubr.f32.gmra.mrb[0].mxu0 %v1666
    %v1739 = vpop.f32.mrb[0].mxu0
    %v1740 = vadd.f32 %v1660, %v1739
    %v1741 = vpop.f32.mrb[0].mxu0
    %1742 = vdwg.mxu0
    %1743 = vst [vmem:[#allocation12] sm:$0xff] %v1735
    %1744 = vst [vmem:[#allocation12 + $0x8] sm:$0xff] %v1740
    // Predicated region
    $region54: #{tpu_custom_call.1} parent=1 // pred_check
      _
    $region55: #{tpu_custom_call.1} parent=1 // pred_check_branch
      %1746 = sbr.rel (0) target = $region57
    $region56: #{tpu_custom_call.1} parent=1 // pred_region
      %s1748 = ssub.s32 256, 256
      %1749 = vsyncadd [#allocation5], %s1748
      %s1750 = sshll.u32 [#allocation12], 4
      %s1751 = int_to_ptr.vmem [resolvable:$true] %s1750
      %1756 = dma.vmem_to_hbm [thread:$0]  %s1751, 256, %s8, [#allocation5], 128, 128, 8
    $region57: #{tpu_custom_call.1} parent=1 // pred_fallthru
      _
    // Predicated region
    $region58: #{tpu_custom_call.1} parent=1 // pred_check
      _
    $region59: #{tpu_custom_call.1} parent=1 // pred_check_branch
      %1758 = sbr.rel (0) target = $region61
    $region60: #{tpu_custom_call.1} parent=1 // pred_region
      %s1760 = ssub.s32 64, 64
      %1761 = vsyncadd [#allocation14], %s1760
      %s1762 = sshll.u32 [#allocation13], 4
      %s1763 = int_to_ptr.vmem [resolvable:$true] %s1762
      %1768 = dma.vmem_to_hbm [thread:$0]  %s1763, 64, %s9, [#allocation14], 32, 32, 2
    $region61: #{tpu_custom_call.1} parent=1 // pred_fallthru
      _
    // Predicated region
    $region62: #{tpu_custom_call.1} parent=1 // pred_check
      _
    $region63: #{tpu_custom_call.1} parent=1 // pred_check_branch
      %1770 = sbr.rel (0) target = $region65
    $region64: #{tpu_custom_call.1} parent=1 // pred_region
      %1771 = dma.done [#allocation5], 256
    $region65: #{tpu_custom_call.1} parent=1 // pred_fallthru
      _
    // Predicated region
    $region66: #{tpu_custom_call.1} parent=1 // pred_check
      _
    $region67: #{tpu_custom_call.1} parent=1 // pred_check_branch
      %1773 = sbr.rel (0) target = $region69
    $region68: #{tpu_custom_call.1} parent=1 // pred_region
      %1774 = dma.done [#allocation14], 64
    $region69: #{tpu_custom_call.1} parent=1 // pred_fallthru
      _
    %1775 = vsyncpa [#allocation4], 1
    %1776 = vsyncpa [#allocation7], 1
    %1777 = vsyncpa [#allocation10], 1
    %1778 = vsyncpa [#allocation5], 1
    %1779 = vsyncpa [#allocation14], 1

</llo_original>
